<compile_context>
chip_gen: v5e
topology: v5e:2x2
jax: 0.10.0
libtpu: 0.0.40
codegen_flags: <defaults>
</compile_context>

<pallas_src>
import jax
import jax.numpy as jnp
from jax.experimental import pallas as pl
from jax.experimental.pallas import tpu as pltpu


# ----------------------------------------------------------------------------
# Pallas kernel: AdditiveAttention pooling
# ----------------------------------------------------------------------------
def _additive_attention_kernel(x_ref, mask_ref, w1_ref, b1_ref, w2_ref, b2_ref,
                               out_ref):
    # x_ref:    (bb, S, D)  f32   word vectors for this batch tile
    # mask_ref: (bb, S, 1)  f32   attention mask (0/1), zero for padded rows
    # w1_ref:   (D, Hp)     f32   att_fc1 weight (hidden padded to Hp, lane-dense)
    # b1_ref:   (1, Hp)     f32   att_fc1 bias
    # w2_ref:   (1, Hp)     f32   att_fc2 weight (row vector, padded)
    # b2_ref:   (1, 1)      f32   att_fc2 bias (SMEM scalar)
    # out_ref:  (bb, D)     f32   pooled vectors (lane-dense, D multiple of 128)
    bb, S, D = x_ref.shape
    Hp = w1_ref.shape[1]

    x = x_ref[...]                                     # (bb, S, D)
    x2 = x.reshape(bb * S, D)                          # tile-aligned merge (bb % 8 == 0)

    # att_fc1 + tanh: MXU matmul (M = bb*S), EUP tanh
    e = jnp.tanh(
        jnp.dot(x2, w1_ref[...], preferred_element_type=jnp.float32)
        + b1_ref[...])                                 # (bb*S, Hp)
    e3 = e.reshape(bb, S, Hp)

    # att_fc2 logit per token: VPU multiply + XLU lane reduce (free slots
    # next to the MXU matmul above)
    score = (jnp.sum(e3 * w2_ref[...][None, :, :], axis=-1, keepdims=True)
             + b2_ref[0, 0])                           # (bb, S, 1)

    alpha = jnp.exp(score) * mask_ref[...]             # (bb, S, 1)
    denom = jnp.sum(alpha, axis=1, keepdims=True) + 1e-8
    alpha = alpha / denom                              # (bb, S, 1)

    # weighted token pooling -> (bb, D); lane-dense store
    out_ref[...] = jnp.sum(alpha * x, axis=1).astype(out_ref.dtype)


def additive_attention_forward(x, mask, w1, b1, w2, b2, *, batch_tile=None):
    """AdditiveAttention.forward.  x: (B, S, D); mask: (B, S) or None -> (B, D)."""
    x = x.astype(jnp.float32)
    B, S, D = x.shape
    H = w1.shape[1]

    # Pad attention hidden dim to a lane-dense multiple of 128.  Zero padding is
    # exact: padded columns give tanh(0) = 0 and meet zero w2 entries.
    Hp = ((H + 127) // 128) * 128
    if Hp != H:
        w1 = jnp.pad(w1, ((0, 0), (0, Hp - H)))
        b1 = jnp.pad(b1, (0, Hp - H))
        w2 = jnp.pad(w2, (0, Hp - H))
    w1 = w1.astype(jnp.float32)
    b1r = b1.reshape(1, Hp).astype(jnp.float32)
    w2r = w2.reshape(1, Hp).astype(jnp.float32)
    b2r = jnp.asarray(b2, jnp.float32).reshape(1, 1)

    if mask is None:
        mask = jnp.ones((B, S), jnp.float32)
    mask3 = mask.astype(jnp.float32).reshape(B, S, 1)

    # Batch tile: multiple of 8 sublanes, big enough to fill the MXU M dim
    # (M = batch_tile * S) and amortize per-grid-step overhead, but capped so
    # the double-buffered x tile stays a few MiB (well inside the scoped-VMEM
    # default on v5e/v6e/v7x).
    if batch_tile is None:
        row_bytes = S * D * 4
        budget = 4 * 1024 * 1024                       # per-buffer x-tile budget
        bt = max(8, min(128, (budget // max(row_bytes, 1)) // 8 * 8))
        batch_tile = max(8, min(bt, ((B + 7) // 8) * 8))
    Bp = ((B + batch_tile - 1) // batch_tile) * batch_tile
    if Bp != B:
        # padded rows carry mask == 0 -> alpha == 0 -> pooled output 0 (dropped below)
        x = jnp.pad(x, ((0, Bp - B), (0, 0), (0, 0)))
        mask3 = jnp.pad(mask3, ((0, Bp - B), (0, 0), (0, 0)))

    grid = (Bp // batch_tile,)
    out = pl.pallas_call(
        _additive_attention_kernel,
        out_shape=jax.ShapeDtypeStruct((Bp, D), jnp.float32),
        grid_spec=pltpu.PrefetchScalarGridSpec(
            num_scalar_prefetch=0,
            grid=grid,
            in_specs=[
                pl.BlockSpec((batch_tile, S, D), lambda i: (i, 0, 0)),   # x tile
                pl.BlockSpec((batch_tile, S, 1), lambda i: (i, 0, 0)),   # mask tile
                pl.BlockSpec((D, Hp), lambda i: (0, 0)),                 # W1 (VMEM resident)
                pl.BlockSpec((1, Hp), lambda i: (0, 0)),                 # b1
                pl.BlockSpec((1, Hp), lambda i: (0, 0)),                 # w2 row
                pl.BlockSpec(memory_space=pltpu.MemorySpace.SMEM),       # b2 scalar
            ],
            out_specs=pl.BlockSpec((batch_tile, D), lambda i: (i, 0)),
        ),
        compiler_params=pltpu.CompilerParams(
            dimension_semantics=("parallel",)),
    )(x, mask3, w1, b1r, w2r, b2r)
    return out[:B]


# ----------------------------------------------------------------------------
# Stand-in BERT (external dependency of TextEncoder) -- plain JAX
# ----------------------------------------------------------------------------
# TODO(synk): self.bert_model is an externally supplied pretrained BERT passed
# into the constructor; it is not part of this module, so a small deterministic
# plain-JAX stand-in produces the per-layer hidden states / attention maps that
# the forward pass consumes.
def init_mock_bert(key, vocab_size, num_words, hidden=768, layers=2, heads=2):
    ks = jax.random.split(key, 3 + 4 * layers)
    s = 0.02
    params = {
        "word": s * jax.random.normal(ks[0], (vocab_size, hidden), jnp.float32),
        "type": s * jax.random.normal(ks[1], (2, hidden), jnp.float32),
        "pos":  s * jax.random.normal(ks[2], (num_words, hidden), jnp.float32),
        "layers": [],
        "heads": heads,
    }
    for l in range(layers):
        k = ks[3 + 4 * l: 7 + 4 * l]
        params["layers"].append({
            "wq": s * jax.random.normal(k[0], (hidden, hidden), jnp.float32),
            "wk": s * jax.random.normal(k[1], (hidden, hidden), jnp.float32),
            "wv": s * jax.random.normal(k[2], (hidden, hidden), jnp.float32),
            "wo": s * jax.random.normal(k[3], (hidden, hidden), jnp.float32),
        })
    return params


def mock_bert_apply(params, ids, type_ids, attmask):
    B, S = ids.shape
    H = params["word"].shape[1]
    nh = params["heads"]
    hd = H // nh
    h = params["word"][ids] + params["type"][type_ids] + params["pos"][None, :, :]
    hidden_states = [h]
    attentions = []
    neg = -1e9 * (1.0 - attmask.astype(jnp.float32))            # (B, S)
    for lp in params["layers"]:
        q = (h @ lp["wq"]).reshape(B, S, nh, hd).transpose(0, 2, 1, 3)
        k = (h @ lp["wk"]).reshape(B, S, nh, hd).transpose(0, 2, 1, 3)
        v = (h @ lp["wv"]).reshape(B, S, nh, hd).transpose(0, 2, 1, 3)
        scores = jnp.einsum("bhqd,bhkd->bhqk", q, k) / jnp.sqrt(float(hd))
        scores = scores + neg[:, None, None, :]
        att = jax.nn.softmax(scores, axis=-1)                    # (B, nh, S, S)
        ctx = jnp.einsum("bhqk,bhkd->bhqd", att, v)
        ctx = ctx.transpose(0, 2, 1, 3).reshape(B, S, H)
        h = jnp.tanh(ctx @ lp["wo"] + h)
        hidden_states.append(h)
        attentions.append(att)
    return hidden_states, attentions


# ----------------------------------------------------------------------------
# TextEncoder.forward
# ----------------------------------------------------------------------------
def text_encoder_forward(text, mask, bert_params, att_params, nlayer):
    """text: (B, 3*num_words) int32; mask: (B, num_words) or None."""
    B, total = text.shape
    num_words = total // 3
    text_ids = text[:, :num_words]
    text_type = text[:, num_words:2 * num_words]
    text_attmask = text[:, 2 * num_words:3 * num_words]

    hidden_states, attentions = mock_bert_apply(
        bert_params, text_ids, text_type, text_attmask)

    word_emb = hidden_states[nlayer]                  # temp[3][self.nlayer]
    # TODO(synk): F.dropout is identity at inference; stochastic training-mode
    # dropout is not implemented here.
    w1, b1, w2, b2 = att_params
    text_vector = additive_attention_forward(word_emb, mask, w1, b1, w2, b2)

    word_emb2 = jnp.stack(hidden_states, axis=1)      # torch.stack(temp[3], dim=1)
    word_att = jnp.stack(attentions, axis=1)          # torch.stack(temp[4], dim=1)
    return text_vector, word_emb, word_emb2, word_att


# ----------------------------------------------------------------------------
# Plain-JAX reference for the Pallas kernel (PyTorch AdditiveAttention semantics)
# ----------------------------------------------------------------------------
def _additive_attention_ref(x, mask, w1, b1, w2, b2):
    e = jnp.tanh(x @ w1 + b1)                         # (B, S, H)
    alpha = jnp.exp(e @ w2[:, None] + b2)             # (B, S, 1)
    if mask is not None:
        alpha = alpha * mask[:, :, None]
    alpha = alpha / (jnp.sum(alpha, axis=1, keepdims=True) + 1e-8)
    return jnp.sum(alpha * x, axis=1)                 # (B, D)


if __name__ == "__main__":
    key = jax.random.PRNGKey(0)
    k_bert, k_att, k_ids = jax.random.split(key, 3)

    B = 2
    num_words = 8
    vocab = 32
    D = 768                 # AdditiveAttention(768, query_vector_dim) in the module
    query_vector_dim = 200
    layers = 2
    nlayer = layers         # last hidden state (hidden_states has layers+1 entries)
    heads = 2

    bert_params = init_mock_bert(k_bert, vocab, num_words, hidden=D,
                                 layers=layers, heads=heads)

    kw1, kb1, kw2, kb2 = jax.random.split(k_att, 4)
    w1 = 0.05 * jax.random.normal(kw1, (D, query_vector_dim), jnp.float32)
    b1 = 0.05 * jax.random.normal(kb1, (query_vector_dim,), jnp.float32)
    w2 = 0.05 * jax.random.normal(kw2, (query_vector_dim,), jnp.float32)
    b2 = 0.05 * jax.random.normal(kb2, (), jnp.float32)
    att_params = (w1, b1, w2, b2)

    ids = jax.random.randint(k_ids, (B, num_words), 1, vocab, dtype=jnp.int32)
    types = jnp.zeros((B, num_words), jnp.int32)
    attmask = jnp.concatenate([jnp.ones((B, num_words - 2), jnp.int32),
                               jnp.zeros((B, 2), jnp.int32)], axis=1)
    text = jnp.concatenate([ids, types, attmask], axis=1)        # (B, 3*num_words)
    mask = attmask.astype(jnp.float32)                           # (B, num_words)

    text_vector, word_emb, word_emb2, word_att = text_encoder_forward(
        text, mask, bert_params, att_params, nlayer)
    text_vector = jax.block_until_ready(text_vector)

    # shape checks
    assert text_vector.shape == (B, D)
    assert word_emb.shape == (B, num_words, D)
    assert word_emb2.shape == (B, layers + 1, num_words, D)
    assert word_att.shape == (B, layers, heads, num_words, num_words)

    # Pallas kernel vs plain-JAX reference for the additive-attention pooling
    ref = _additive_attention_ref(word_emb, mask, w1, b1, w2, b2)
    err = float(jnp.max(jnp.abs(text_vector - ref)))
    assert jnp.allclose(text_vector, ref, atol=1e-4, rtol=1e-4), f"mismatch {err}"

    # masked + unmasked agree with the reference when mask is all ones
    out_nomask = additive_attention_forward(word_emb, None, w1, b1, w2, b2)
    ref_nomask = _additive_attention_ref(word_emb, None, w1, b1, w2, b2)
    assert jnp.allclose(out_nomask, ref_nomask, atol=1e-4, rtol=1e-4)

    print("KERNEL_OK")
</pallas_src>

<mosaic_0001>
module attributes {stable_mosaic.version = 11 : i64} {
  func.func @_additive_attention_kernel(%arg0: i32, %arg1: memref<8x8x768xf32, #tpu.memory_space<vmem>>, %arg2: memref<8x8x1xf32, #tpu.memory_space<vmem>>, %arg3: memref<768x256xf32, #tpu.memory_space<vmem>>, %arg4: memref<1x256xf32, #tpu.memory_space<vmem>>, %arg5: memref<1x256xf32, #tpu.memory_space<vmem>>, %arg6: memref<1x1xf32, #tpu.memory_space<smem>>, %arg7: memref<8x768xf32, #tpu.memory_space<vmem>>) attributes {dimension_semantics = [#tpu.dimension_semantics<parallel>], iteration_bounds = array<i64: 1>, scalar_prefetch = 0 : i64, scratch_operands = 0 : i64, tpu.core_type = #tpu.core_type<tc>, window_params = [{transform_indices = @transform_0, window_bounds = array<i64: 8, 8, 768>}, {transform_indices = @transform_1, window_bounds = array<i64: 8, 8, 1>}, {pipeline_mode = #tpu.pipeline_mode<synchronous>, transform_indices = @transform_2, window_bounds = array<i64: 768, 256>}, {pipeline_mode = #tpu.pipeline_mode<synchronous>, transform_indices = @transform_3, window_bounds = array<i64: 1, 256>}, {pipeline_mode = #tpu.pipeline_mode<synchronous>, transform_indices = @transform_4, window_bounds = array<i64: 1, 256>}, {transform_indices = @transform_5, window_bounds = array<i64: 1, 1>}, {transform_indices = @transform_6, window_bounds = array<i64: 8, 768>}]} {
    %c0 = arith.constant 0 : index
    %c0_0 = arith.constant 0 : index
    %c0_1 = arith.constant 0 : index
    %0 = vector.load %arg1[%c0, %c0_0, %c0_1] : memref<8x8x768xf32, #tpu.memory_space<vmem>>, vector<8x8x768xf32>
    %1 = vector.shape_cast %0 : vector<8x8x768xf32> to vector<64x768xf32>
    %c0_2 = arith.constant 0 : index
    %c0_3 = arith.constant 0 : index
    %2 = vector.load %arg3[%c0_2, %c0_3] : memref<768x256xf32, #tpu.memory_space<vmem>>, vector<768x256xf32>
    %cst = arith.constant dense<0.000000e+00> : vector<64x256xf32>
    %3 = tpu.matmul %1, %2, %cst {dimension_numbers = #tpu.dot_dimension_numbers<[1], [0], [0], [1], [0, 0, 1, 1], [], []>} : vector<64x768xf32>, vector<768x256xf32>, vector<64x256xf32> -> vector<64x256xf32>
    %c0_4 = arith.constant 0 : index
    %c0_5 = arith.constant 0 : index
    %4 = vector.load %arg4[%c0_4, %c0_5] : memref<1x256xf32, #tpu.memory_space<vmem>>, vector<1x256xf32>
    %5 = vector.broadcast %4 : vector<1x256xf32> to vector<64x256xf32>
    %6 = arith.addf %3, %5 : vector<64x256xf32>
    %7 = math.tanh %6 : vector<64x256xf32>
    %8 = vector.shape_cast %7 : vector<64x256xf32> to vector<8x8x256xf32>
    %c0_6 = arith.constant 0 : index
    %c0_7 = arith.constant 0 : index
    %9 = vector.load %arg5[%c0_6, %c0_7] : memref<1x256xf32, #tpu.memory_space<vmem>>, vector<1x256xf32>
    %10 = vector.shape_cast %9 : vector<1x256xf32> to vector<1x1x256xf32>
    %11 = vector.broadcast %10 : vector<1x1x256xf32> to vector<8x8x256xf32>
    %12 = arith.mulf %8, %11 : vector<8x8x256xf32>
    %cst_8 = arith.constant dense<0.000000e+00> : vector<8x8xf32>
    %13 = vector.multi_reduction <add>, %12, %cst_8 [2] : vector<8x8x256xf32> to vector<8x8xf32>
    %14 = vector.shape_cast %13 : vector<8x8xf32> to vector<8x8x1xf32>
    %c0_9 = arith.constant 0 : index
    %c0_10 = arith.constant 0 : index
    %15 = memref.load %arg6[%c0_9, %c0_10] : memref<1x1xf32, #tpu.memory_space<smem>>
    %16 = vector.broadcast %15 : f32 to vector<8x8x1xf32>
    %17 = arith.addf %14, %16 : vector<8x8x1xf32>
    %18 = math.exp %17 : vector<8x8x1xf32>
    %c0_11 = arith.constant 0 : index
    %c0_12 = arith.constant 0 : index
    %c0_13 = arith.constant 0 : index
    %19 = vector.load %arg2[%c0_11, %c0_12, %c0_13] : memref<8x8x1xf32, #tpu.memory_space<vmem>>, vector<8x8x1xf32>
    %20 = arith.mulf %18, %19 : vector<8x8x1xf32>
    %cst_14 = arith.constant dense<0.000000e+00> : vector<8x1xf32>
    %21 = vector.multi_reduction <add>, %20, %cst_14 [1] : vector<8x8x1xf32> to vector<8x1xf32>
    %22 = vector.shape_cast %21 : vector<8x1xf32> to vector<8x1x1xf32>
    %cst_15 = arith.constant 9.99999993E-9 : f32
    %23 = vector.broadcast %cst_15 : f32 to vector<8x1x1xf32>
    %24 = arith.addf %22, %23 : vector<8x1x1xf32>
    %25 = vector.broadcast %24 : vector<8x1x1xf32> to vector<8x8x1xf32>
    %26 = arith.divf %20, %25 : vector<8x8x1xf32>
    %27 = vector.broadcast %26 : vector<8x8x1xf32> to vector<8x8x768xf32>
    %28 = arith.mulf %27, %0 : vector<8x8x768xf32>
    %cst_16 = arith.constant dense<0.000000e+00> : vector<8x768xf32>
    %29 = vector.multi_reduction <add>, %28, %cst_16 [1] : vector<8x8x768xf32> to vector<8x768xf32>
    %c0_17 = arith.constant 0 : index
    %c0_18 = arith.constant 0 : index
    %30 = vector.load %arg7[%c0_17, %c0_18] : memref<8x768xf32, #tpu.memory_space<vmem>>, vector<8x768xf32>
    tpu.vector_store %arg7[%c0_17, %c0_18], %29 {strides = array<i32>} : memref<8x768xf32, #tpu.memory_space<vmem>>, vector<8x768xf32>,
    return
  }
  func.func @transform_0(%arg0: i32) -> (i32, i32, i32) {
    %c0_i32 = arith.constant 0 : i32
    %c0_i32_0 = arith.constant 0 : i32
    %c0_i32_1 = arith.constant 0 : i32
    return %arg0, %c0_i32, %c0_i32_0 : i32, i32, i32
  }
  func.func @transform_1(%arg0: i32) -> (i32, i32, i32) {
    %c0_i32 = arith.constant 0 : i32
    %c0_i32_0 = arith.constant 0 : i32
    %c0_i32_1 = arith.constant 0 : i32
    return %arg0, %c0_i32, %c0_i32_0 : i32, i32, i32
  }
  func.func @transform_2(%arg0: i32) -> (i32, i32) {
    %c0_i32 = arith.constant 0 : i32
    %c0_i32_0 = arith.constant 0 : i32
    %c0_i32_1 = arith.constant 0 : i32
    return %c0_i32, %c0_i32_0 : i32, i32
  }
  func.func @transform_3(%arg0: i32) -> (i32, i32) {
    %c0_i32 = arith.constant 0 : i32
    %c0_i32_0 = arith.constant 0 : i32
    %c0_i32_1 = arith.constant 0 : i32
    return %c0_i32, %c0_i32_0 : i32, i32
  }
  func.func @transform_4(%arg0: i32) -> (i32, i32) {
    %c0_i32 = arith.constant 0 : i32
    %c0_i32_0 = arith.constant 0 : i32
    %c0_i32_1 = arith.constant 0 : i32
    return %c0_i32, %c0_i32_0 : i32, i32
  }
  func.func @transform_5(%arg0: i32) -> (i32, i32) {
    %c0_i32 = arith.constant 0 : i32
    %c0_i32_0 = arith.constant 0 : i32
    %c0_i32_1 = arith.constant 0 : i32
    return %c0_i32, %c0_i32_0 : i32, i32
  }
  func.func @transform_6(%arg0: i32) -> (i32, i32) {
    %c0_i32 = arith.constant 0 : i32
    %c0_i32_0 = arith.constant 0 : i32
    return %arg0, %c0_i32 : i32, i32
  }
}

</mosaic_0001>

<llo_original>
// kernel: tpu_custom_call.1
$region0: #{tpu_custom_call.1}
  #allocation0 [shape = 'u32[]', space=smem, size = 0x4, offset = 0x4, fixed_abs, tag = 'smem constant byte address 0x4 - core index']
  #allocation1 [shape = 'u32[72,128]{1,0:T(1,128)}', space=vmem, size = 0x9000, scoped, tag = 'internal scratch']
  #allocation2 [shape = 'f32[1,1]{1,0:T(1,128)S(6)}', space=smem, size = 0x200, scoped, tag = 'scoped memory for tpu_custom_call.1']
  %s0 = inlined_call_operand.hbm [shape: f32[8,8,768], index: 0, kind: input, shape index: {}]
  %s1 = inlined_call_operand.vmem [shape: f32[8,8,1], index: 1, kind: input, shape index: {}]
  %s2 = inlined_call_operand.hbm [shape: f32[768,256], index: 2, kind: input, shape index: {}]
  %s3 = inlined_call_operand.vmem [shape: f32[1,256], index: 3, kind: input, shape index: {}]
  %s4 = inlined_call_operand.vmem [shape: f32[1,256], index: 4, kind: input, shape index: {}]
  %s5 = inlined_call_operand.<no memory space> [shape: f32[1,1], index: 5, kind: input, shape index: {}]
  %s6 = inlined_call_operand.hbm [shape: f32[8,768], index: 6, kind: output, shape index: {}]
  %s7 = sld [smem:[#allocation0]]
  $region42: #{tpu_custom_call.1} parent=0
    _
  %s9 = ssub.s32 1, %s7
  %s10 = scalar_select 0, %s9, %s7
  %11 = sst [smem:[#allocation2]] %s5
  $region1: #{tpu_custom_call.1} parent=0
    #allocation3 [shape = 'u8[196608]{0}', space=vmem, size = 0x30000, scoped, tag = 'input window, operand 0, single buffered']
    #allocation4 [shape = 's32[1]{0}', space=sflag, size = 0x4, scoped, tag = 'scoped memory for tpu_custom_call.1']
    #allocation5 [shape = 's32[1]{0}', space=sflag, size = 0x4, scoped, tag = 'scoped memory for tpu_custom_call.1']
    #allocation6 [shape = 'u8[786432]{0}', space=vmem, size = 0xc0000, scoped, tag = 'input window, operand 2, single buffered']
    #allocation7 [shape = 's32[1]{0}', space=sflag, size = 0x4, scoped, tag = 'scoped memory for tpu_custom_call.1']
    #allocation8 [shape = 'u8[24576]{0}', space=vmem, size = 0x6000, scoped, tag = 'output window, operand 0, single buffered']
    %12 = vsyncpa [#allocation4], 0
    %13 = vsyncpa [#allocation7], 0
    %14 = vsyncpa [#allocation5], 0
    // Predicated region
    $region2: #{tpu_custom_call.1} parent=1 // pred_check
      _
    $region3: #{tpu_custom_call.1} parent=1 // pred_check_branch
      %16 = sbr.rel (0) target = $region5
    $region4: #{tpu_custom_call.1} parent=1 // pred_region
      %18 = vsyncadd [#allocation4], 0
      %s19 = sshll.u32 %s0, 4
      %s20 = int_to_ptr.hbm [resolvable:$true] %s19
      %s21 = sshll.u32 [#allocation3], 4
      %s22 = int_to_ptr.vmem [resolvable:$true] %s21
      %27 = dma.hbm_to_vmem [thread:$0]  %s20, 6144, %s22, [#allocation4], 768, 768, 48
    $region5: #{tpu_custom_call.1} parent=1 // pred_fallthru
      _
    // Predicated region
    $region6: #{tpu_custom_call.1} parent=1 // pred_check
      _
    $region7: #{tpu_custom_call.1} parent=1 // pred_check_branch
      %29 = sbr.rel (0) target = $region9
    $region8: #{tpu_custom_call.1} parent=1 // pred_region
      _
    $region9: #{tpu_custom_call.1} parent=1 // pred_fallthru
      _
    // Predicated region
    $region10: #{tpu_custom_call.1} parent=1 // pred_check
      _
    $region11: #{tpu_custom_call.1} parent=1 // pred_check_branch
      %31 = sbr.rel (0) target = $region13
    $region12: #{tpu_custom_call.1} parent=1 // pred_region
      %33 = vsyncadd [#allocation7], 0
      %s34 = sshll.u32 %s2, 4
      %s35 = int_to_ptr.hbm [resolvable:$true] %s34
      %s36 = sshll.u32 [#allocation6], 4
      %s37 = int_to_ptr.vmem [resolvable:$true] %s36
      %42 = dma.hbm_to_vmem [thread:$0]  %s35, 24576, %s37, [#allocation7], 256, 256, 16
    $region13: #{tpu_custom_call.1} parent=1 // pred_fallthru
      _
    // Predicated region
    $region14: #{tpu_custom_call.1} parent=1 // pred_check
      _
    $region15: #{tpu_custom_call.1} parent=1 // pred_check_branch
      %44 = sbr.rel (0) target = $region17
    $region16: #{tpu_custom_call.1} parent=1 // pred_region
      _
    $region17: #{tpu_custom_call.1} parent=1 // pred_fallthru
      _
    // Predicated region
    $region18: #{tpu_custom_call.1} parent=1 // pred_check
      _
    $region19: #{tpu_custom_call.1} parent=1 // pred_check_branch
      %46 = sbr.rel (0) target = $region21
    $region20: #{tpu_custom_call.1} parent=1 // pred_region
      _
    $region21: #{tpu_custom_call.1} parent=1 // pred_fallthru
      _
    // Predicated region
    $region22: #{tpu_custom_call.1} parent=1 // pred_check
      _
    $region23: #{tpu_custom_call.1} parent=1 // pred_check_branch
      %48 = sbr.rel (0) target = $region25
    $region24: #{tpu_custom_call.1} parent=1 // pred_region
      _
    $region25: #{tpu_custom_call.1} parent=1 // pred_fallthru
      _
    // Predicated region
    $region26: #{tpu_custom_call.1} parent=1 // pred_check
      _
    $region27: #{tpu_custom_call.1} parent=1 // pred_check_branch
      %50 = sbr.rel (0) target = $region29
    $region28: #{tpu_custom_call.1} parent=1 // pred_region
      %52 = dma.done [#allocation4], 6144
    $region29: #{tpu_custom_call.1} parent=1 // pred_fallthru
      _
    // Predicated region
    $region30: #{tpu_custom_call.1} parent=1 // pred_check
      _
    $region31: #{tpu_custom_call.1} parent=1 // pred_check_branch
      %54 = sbr.rel (0) target = $region33
    $region32: #{tpu_custom_call.1} parent=1 // pred_region
      %56 = dma.done [#allocation7], 24576
    $region33: #{tpu_custom_call.1} parent=1 // pred_fallthru
      _
    %v57 = vld [vmem:[#allocation3] sm:$0xff]
    %v58 = vld [vmem:[#allocation3 + $0x8] sm:$0xff]
    %v59 = vld [vmem:[#allocation3 + $0x10] sm:$0xff]
    %v60 = vld [vmem:[#allocation3 + $0x18] sm:$0xff]
    %v61 = vld [vmem:[#allocation3 + $0x20] sm:$0xff]
    %v62 = vld [vmem:[#allocation3 + $0x28] sm:$0xff]
    %v63 = vld [vmem:[#allocation3 + $0x30] sm:$0xff]
    %v64 = vld [vmem:[#allocation3 + $0x38] sm:$0xff]
    %v65 = vld [vmem:[#allocation3 + $0x40] sm:$0xff]
    %v66 = vld [vmem:[#allocation3 + $0x48] sm:$0xff]
    %v67 = vld [vmem:[#allocation3 + $0x50] sm:$0xff]
    %v68 = vld [vmem:[#allocation3 + $0x58] sm:$0xff]
    %v69 = vld [vmem:[#allocation3 + $0x60] sm:$0xff]
    %v70 = vld [vmem:[#allocation3 + $0x68] sm:$0xff]
    %v71 = vld [vmem:[#allocation3 + $0x70] sm:$0xff]
    %v72 = vld [vmem:[#allocation3 + $0x78] sm:$0xff]
    %v73 = vld [vmem:[#allocation3 + $0x80] sm:$0xff]
    %v74 = vld [vmem:[#allocation3 + $0x88] sm:$0xff]
    %v75 = vld [vmem:[#allocation3 + $0x90] sm:$0xff]
    %v76 = vld [vmem:[#allocation3 + $0x98] sm:$0xff]
    %v77 = vld [vmem:[#allocation3 + $0xa0] sm:$0xff]
    %v78 = vld [vmem:[#allocation3 + $0xa8] sm:$0xff]
    %v79 = vld [vmem:[#allocation3 + $0xb0] sm:$0xff]
    %v80 = vld [vmem:[#allocation3 + $0xb8] sm:$0xff]
    %v81 = vld [vmem:[#allocation3 + $0xc0] sm:$0xff]
    %v82 = vld [vmem:[#allocation3 + $0xc8] sm:$0xff]
    %v83 = vld [vmem:[#allocation3 + $0xd0] sm:$0xff]
    %v84 = vld [vmem:[#allocation3 + $0xd8] sm:$0xff]
    %v85 = vld [vmem:[#allocation3 + $0xe0] sm:$0xff]
    %v86 = vld [vmem:[#allocation3 + $0xe8] sm:$0xff]
    %v87 = vld [vmem:[#allocation3 + $0xf0] sm:$0xff]
    %v88 = vld [vmem:[#allocation3 + $0xf8] sm:$0xff]
    %v89 = vld [vmem:[#allocation3 + $0x100] sm:$0xff]
    %v90 = vld [vmem:[#allocation3 + $0x108] sm:$0xff]
    %v91 = vld [vmem:[#allocation3 + $0x110] sm:$0xff]
    %v92 = vld [vmem:[#allocation3 + $0x118] sm:$0xff]
    %v93 = vld [vmem:[#allocation3 + $0x120] sm:$0xff]
    %v94 = vld [vmem:[#allocation3 + $0x128] sm:$0xff]
    %v95 = vld [vmem:[#allocation3 + $0x130] sm:$0xff]
    %v96 = vld [vmem:[#allocation3 + $0x138] sm:$0xff]
    %v97 = vld [vmem:[#allocation3 + $0x140] sm:$0xff]
    %v98 = vld [vmem:[#allocation3 + $0x148] sm:$0xff]
    %v99 = vld [vmem:[#allocation3 + $0x150] sm:$0xff]
    %v100 = vld [vmem:[#allocation3 + $0x158] sm:$0xff]
    %v101 = vld [vmem:[#allocation3 + $0x160] sm:$0xff]
    %v102 = vld [vmem:[#allocation3 + $0x168] sm:$0xff]
    %v103 = vld [vmem:[#allocation3 + $0x170] sm:$0xff]
    %v104 = vld [vmem:[#allocation3 + $0x178] sm:$0xff]
    %v105 = vld [vmem:[#allocation6] sm:$0xff]
    %v106 = vld [vmem:[#allocation6 + $0x8] sm:$0xff]
    %v107 = vld [vmem:[#allocation6 + $0x10] sm:$0xff]
    %v108 = vld [vmem:[#allocation6 + $0x18] sm:$0xff]
    %v109 = vld [vmem:[#allocation6 + $0x20] sm:$0xff]
    %v110 = vld [vmem:[#allocation6 + $0x28] sm:$0xff]
    %v111 = vld [vmem:[#allocation6 + $0x30] sm:$0xff]
    %v112 = vld [vmem:[#allocation6 + $0x38] sm:$0xff]
    %v113 = vld [vmem:[#allocation6 + $0x40] sm:$0xff]
    %v114 = vld [vmem:[#allocation6 + $0x48] sm:$0xff]
    %v115 = vld [vmem:[#allocation6 + $0x50] sm:$0xff]
    %v116 = vld [vmem:[#allocation6 + $0x58] sm:$0xff]
    %v117 = vld [vmem:[#allocation6 + $0x60] sm:$0xff]
    %v118 = vld [vmem:[#allocation6 + $0x68] sm:$0xff]
    %v119 = vld [vmem:[#allocation6 + $0x70] sm:$0xff]
    %v120 = vld [vmem:[#allocation6 + $0x78] sm:$0xff]
    %v121 = vld [vmem:[#allocation6 + $0x80] sm:$0xff]
    %v122 = vld [vmem:[#allocation6 + $0x88] sm:$0xff]
    %v123 = vld [vmem:[#allocation6 + $0x90] sm:$0xff]
    %v124 = vld [vmem:[#allocation6 + $0x98] sm:$0xff]
    %v125 = vld [vmem:[#allocation6 + $0xa0] sm:$0xff]
    %v126 = vld [vmem:[#allocation6 + $0xa8] sm:$0xff]
    %v127 = vld [vmem:[#allocation6 + $0xb0] sm:$0xff]
    %v128 = vld [vmem:[#allocation6 + $0xb8] sm:$0xff]
    %v129 = vld [vmem:[#allocation6 + $0xc0] sm:$0xff]
    %v130 = vld [vmem:[#allocation6 + $0xc8] sm:$0xff]
    %v131 = vld [vmem:[#allocation6 + $0xd0] sm:$0xff]
    %v132 = vld [vmem:[#allocation6 + $0xd8] sm:$0xff]
    %v133 = vld [vmem:[#allocation6 + $0xe0] sm:$0xff]
    %v134 = vld [vmem:[#allocation6 + $0xe8] sm:$0xff]
    %v135 = vld [vmem:[#allocation6 + $0xf0] sm:$0xff]
    %v136 = vld [vmem:[#allocation6 + $0xf8] sm:$0xff]
    %v137 = vld [vmem:[#allocation6 + $0x100] sm:$0xff]
    %v138 = vld [vmem:[#allocation6 + $0x108] sm:$0xff]
    %v139 = vld [vmem:[#allocation6 + $0x110] sm:$0xff]
    %v140 = vld [vmem:[#allocation6 + $0x118] sm:$0xff]
    %v141 = vld [vmem:[#allocation6 + $0x120] sm:$0xff]
    %v142 = vld [vmem:[#allocation6 + $0x128] sm:$0xff]
    %v143 = vld [vmem:[#allocation6 + $0x130] sm:$0xff]
    %v144 = vld [vmem:[#allocation6 + $0x138] sm:$0xff]
    %v145 = vld [vmem:[#allocation6 + $0x140] sm:$0xff]
    %v146 = vld [vmem:[#allocation6 + $0x148] sm:$0xff]
    %v147 = vld [vmem:[#allocation6 + $0x150] sm:$0xff]
    %v148 = vld [vmem:[#allocation6 + $0x158] sm:$0xff]
    %v149 = vld [vmem:[#allocation6 + $0x160] sm:$0xff]
    %v150 = vld [vmem:[#allocation6 + $0x168] sm:$0xff]
    %v151 = vld [vmem:[#allocation6 + $0x170] sm:$0xff]
    %v152 = vld [vmem:[#allocation6 + $0x178] sm:$0xff]
    %v153 = vld [vmem:[#allocation6 + $0x180] sm:$0xff]
    %v154 = vld [vmem:[#allocation6 + $0x188] sm:$0xff]
    %v155 = vld [vmem:[#allocation6 + $0x190] sm:$0xff]
    %v156 = vld [vmem:[#allocation6 + $0x198] sm:$0xff]
    %v157 = vld [vmem:[#allocation6 + $0x1a0] sm:$0xff]
    %v158 = vld [vmem:[#allocation6 + $0x1a8] sm:$0xff]
    %v159 = vld [vmem:[#allocation6 + $0x1b0] sm:$0xff]
    %v160 = vld [vmem:[#allocation6 + $0x1b8] sm:$0xff]
    %v161 = vld [vmem:[#allocation6 + $0x1c0] sm:$0xff]
    %v162 = vld [vmem:[#allocation6 + $0x1c8] sm:$0xff]
    %v163 = vld [vmem:[#allocation6 + $0x1d0] sm:$0xff]
    %v164 = vld [vmem:[#allocation6 + $0x1d8] sm:$0xff]
    %v165 = vld [vmem:[#allocation6 + $0x1e0] sm:$0xff]
    %v166 = vld [vmem:[#allocation6 + $0x1e8] sm:$0xff]
    %v167 = vld [vmem:[#allocation6 + $0x1f0] sm:$0xff]
    %v168 = vld [vmem:[#allocation6 + $0x1f8] sm:$0xff]
    %v169 = vld [vmem:[#allocation6 + $0x200] sm:$0xff]
    %v170 = vld [vmem:[#allocation6 + $0x208] sm:$0xff]
    %v171 = vld [vmem:[#allocation6 + $0x210] sm:$0xff]
    %v172 = vld [vmem:[#allocation6 + $0x218] sm:$0xff]
    %v173 = vld [vmem:[#allocation6 + $0x220] sm:$0xff]
    %v174 = vld [vmem:[#allocation6 + $0x228] sm:$0xff]
    %v175 = vld [vmem:[#allocation6 + $0x230] sm:$0xff]
    %v176 = vld [vmem:[#allocation6 + $0x238] sm:$0xff]
    %v177 = vld [vmem:[#allocation6 + $0x240] sm:$0xff]
    %v178 = vld [vmem:[#allocation6 + $0x248] sm:$0xff]
    %v179 = vld [vmem:[#allocation6 + $0x250] sm:$0xff]
    %v180 = vld [vmem:[#allocation6 + $0x258] sm:$0xff]
    %v181 = vld [vmem:[#allocation6 + $0x260] sm:$0xff]
    %v182 = vld [vmem:[#allocation6 + $0x268] sm:$0xff]
    %v183 = vld [vmem:[#allocation6 + $0x270] sm:$0xff]
    %v184 = vld [vmem:[#allocation6 + $0x278] sm:$0xff]
    %v185 = vld [vmem:[#allocation6 + $0x280] sm:$0xff]
    %v186 = vld [vmem:[#allocation6 + $0x288] sm:$0xff]
    %v187 = vld [vmem:[#allocation6 + $0x290] sm:$0xff]
    %v188 = vld [vmem:[#allocation6 + $0x298] sm:$0xff]
    %v189 = vld [vmem:[#allocation6 + $0x2a0] sm:$0xff]
    %v190 = vld [vmem:[#allocation6 + $0x2a8] sm:$0xff]
    %v191 = vld [vmem:[#allocation6 + $0x2b0] sm:$0xff]
    %v192 = vld [vmem:[#allocation6 + $0x2b8] sm:$0xff]
    %v193 = vld [vmem:[#allocation6 + $0x2c0] sm:$0xff]
    %v194 = vld [vmem:[#allocation6 + $0x2c8] sm:$0xff]
    %v195 = vld [vmem:[#allocation6 + $0x2d0] sm:$0xff]
    %v196 = vld [vmem:[#allocation6 + $0x2d8] sm:$0xff]
    %v197 = vld [vmem:[#allocation6 + $0x2e0] sm:$0xff]
    %v198 = vld [vmem:[#allocation6 + $0x2e8] sm:$0xff]
    %v199 = vld [vmem:[#allocation6 + $0x2f0] sm:$0xff]
    %v200 = vld [vmem:[#allocation6 + $0x2f8] sm:$0xff]
    %v201 = vld [vmem:[#allocation6 + $0x300] sm:$0xff]
    %v202 = vld [vmem:[#allocation6 + $0x308] sm:$0xff]
    %v203 = vld [vmem:[#allocation6 + $0x310] sm:$0xff]
    %v204 = vld [vmem:[#allocation6 + $0x318] sm:$0xff]
    %v205 = vld [vmem:[#allocation6 + $0x320] sm:$0xff]
    %v206 = vld [vmem:[#allocation6 + $0x328] sm:$0xff]
    %v207 = vld [vmem:[#allocation6 + $0x330] sm:$0xff]
    %v208 = vld [vmem:[#allocation6 + $0x338] sm:$0xff]
    %v209 = vld [vmem:[#allocation6 + $0x340] sm:$0xff]
    %v210 = vld [vmem:[#allocation6 + $0x348] sm:$0xff]
    %v211 = vld [vmem:[#allocation6 + $0x350] sm:$0xff]
    %v212 = vld [vmem:[#allocation6 + $0x358] sm:$0xff]
    %v213 = vld [vmem:[#allocation6 + $0x360] sm:$0xff]
    %v214 = vld [vmem:[#allocation6 + $0x368] sm:$0xff]
    %v215 = vld [vmem:[#allocation6 + $0x370] sm:$0xff]
    %v216 = vld [vmem:[#allocation6 + $0x378] sm:$0xff]
    %v217 = vld [vmem:[#allocation6 + $0x380] sm:$0xff]
    %v218 = vld [vmem:[#allocation6 + $0x388] sm:$0xff]
    %v219 = vld [vmem:[#allocation6 + $0x390] sm:$0xff]
    %v220 = vld [vmem:[#allocation6 + $0x398] sm:$0xff]
    %v221 = vld [vmem:[#allocation6 + $0x3a0] sm:$0xff]
    %v222 = vld [vmem:[#allocation6 + $0x3a8] sm:$0xff]
    %v223 = vld [vmem:[#allocation6 + $0x3b0] sm:$0xff]
    %v224 = vld [vmem:[#allocation6 + $0x3b8] sm:$0xff]
    %v225 = vld [vmem:[#allocation6 + $0x3c0] sm:$0xff]
    %v226 = vld [vmem:[#allocation6 + $0x3c8] sm:$0xff]
    %v227 = vld [vmem:[#allocation6 + $0x3d0] sm:$0xff]
    %v228 = vld [vmem:[#allocation6 + $0x3d8] sm:$0xff]
    %v229 = vld [vmem:[#allocation6 + $0x3e0] sm:$0xff]
    %v230 = vld [vmem:[#allocation6 + $0x3e8] sm:$0xff]
    %v231 = vld [vmem:[#allocation6 + $0x3f0] sm:$0xff]
    %v232 = vld [vmem:[#allocation6 + $0x3f8] sm:$0xff]
    %v233 = vld [vmem:[#allocation6 + $0x400] sm:$0xff]
    %v234 = vld [vmem:[#allocation6 + $0x408] sm:$0xff]
    %v235 = vld [vmem:[#allocation6 + $0x410] sm:$0xff]
    %v236 = vld [vmem:[#allocation6 + $0x418] sm:$0xff]
    %v237 = vld [vmem:[#allocation6 + $0x420] sm:$0xff]
    %v238 = vld [vmem:[#allocation6 + $0x428] sm:$0xff]
    %v239 = vld [vmem:[#allocation6 + $0x430] sm:$0xff]
    %v240 = vld [vmem:[#allocation6 + $0x438] sm:$0xff]
    %v241 = vld [vmem:[#allocation6 + $0x440] sm:$0xff]
    %v242 = vld [vmem:[#allocation6 + $0x448] sm:$0xff]
    %v243 = vld [vmem:[#allocation6 + $0x450] sm:$0xff]
    %v244 = vld [vmem:[#allocation6 + $0x458] sm:$0xff]
    %v245 = vld [vmem:[#allocation6 + $0x460] sm:$0xff]
    %v246 = vld [vmem:[#allocation6 + $0x468] sm:$0xff]
    %v247 = vld [vmem:[#allocation6 + $0x470] sm:$0xff]
    %v248 = vld [vmem:[#allocation6 + $0x478] sm:$0xff]
    %v249 = vld [vmem:[#allocation6 + $0x480] sm:$0xff]
    %v250 = vld [vmem:[#allocation6 + $0x488] sm:$0xff]
    %v251 = vld [vmem:[#allocation6 + $0x490] sm:$0xff]
    %v252 = vld [vmem:[#allocation6 + $0x498] sm:$0xff]
    %v253 = vld [vmem:[#allocation6 + $0x4a0] sm:$0xff]
    %v254 = vld [vmem:[#allocation6 + $0x4a8] sm:$0xff]
    %v255 = vld [vmem:[#allocation6 + $0x4b0] sm:$0xff]
    %v256 = vld [vmem:[#allocation6 + $0x4b8] sm:$0xff]
    %v257 = vld [vmem:[#allocation6 + $0x4c0] sm:$0xff]
    %v258 = vld [vmem:[#allocation6 + $0x4c8] sm:$0xff]
    %v259 = vld [vmem:[#allocation6 + $0x4d0] sm:$0xff]
    %v260 = vld [vmem:[#allocation6 + $0x4d8] sm:$0xff]
    %v261 = vld [vmem:[#allocation6 + $0x4e0] sm:$0xff]
    %v262 = vld [vmem:[#allocation6 + $0x4e8] sm:$0xff]
    %v263 = vld [vmem:[#allocation6 + $0x4f0] sm:$0xff]
    %v264 = vld [vmem:[#allocation6 + $0x4f8] sm:$0xff]
    %v265 = vld [vmem:[#allocation6 + $0x500] sm:$0xff]
    %v266 = vld [vmem:[#allocation6 + $0x508] sm:$0xff]
    %v267 = vld [vmem:[#allocation6 + $0x510] sm:$0xff]
    %v268 = vld [vmem:[#allocation6 + $0x518] sm:$0xff]
    %v269 = vld [vmem:[#allocation6 + $0x520] sm:$0xff]
    %v270 = vld [vmem:[#allocation6 + $0x528] sm:$0xff]
    %v271 = vld [vmem:[#allocation6 + $0x530] sm:$0xff]
    %v272 = vld [vmem:[#allocation6 + $0x538] sm:$0xff]
    %v273 = vld [vmem:[#allocation6 + $0x540] sm:$0xff]
    %v274 = vld [vmem:[#allocation6 + $0x548] sm:$0xff]
    %v275 = vld [vmem:[#allocation6 + $0x550] sm:$0xff]
    %v276 = vld [vmem:[#allocation6 + $0x558] sm:$0xff]
    %v277 = vld [vmem:[#allocation6 + $0x560] sm:$0xff]
    %v278 = vld [vmem:[#allocation6 + $0x568] sm:$0xff]
    %v279 = vld [vmem:[#allocation6 + $0x570] sm:$0xff]
    %v280 = vld [vmem:[#allocation6 + $0x578] sm:$0xff]
    %v281 = vld [vmem:[#allocation6 + $0x580] sm:$0xff]
    %v282 = vld [vmem:[#allocation6 + $0x588] sm:$0xff]
    %v283 = vld [vmem:[#allocation6 + $0x590] sm:$0xff]
    %v284 = vld [vmem:[#allocation6 + $0x598] sm:$0xff]
    %v285 = vld [vmem:[#allocation6 + $0x5a0] sm:$0xff]
    %v286 = vld [vmem:[#allocation6 + $0x5a8] sm:$0xff]
    %v287 = vld [vmem:[#allocation6 + $0x5b0] sm:$0xff]
    %v288 = vld [vmem:[#allocation6 + $0x5b8] sm:$0xff]
    %v289 = vld [vmem:[#allocation6 + $0x5c0] sm:$0xff]
    %v290 = vld [vmem:[#allocation6 + $0x5c8] sm:$0xff]
    %v291 = vld [vmem:[#allocation6 + $0x5d0] sm:$0xff]
    %v292 = vld [vmem:[#allocation6 + $0x5d8] sm:$0xff]
    %v293 = vld [vmem:[#allocation6 + $0x5e0] sm:$0xff]
    %v294 = vld [vmem:[#allocation6 + $0x5e8] sm:$0xff]
    %v295 = vld [vmem:[#allocation6 + $0x5f0] sm:$0xff]
    %v296 = vld [vmem:[#allocation6 + $0x5f8] sm:$0xff]
    %v297 = vld [vmem:[%s3] sm:$0x3]
    %v299 = vperm.slane %v297, 0
    %v300 = vperm.slane %v297, 1
    %303 = vmatpush.msra.mxu0 %v135
    %304 = vmatpush.msra.mxu0 %v133
    %305 = vmatpush.msra.mxu0 %v131
    %306 = vmatpush.msra.mxu0 %v129
    %307 = vmatpush.msra.mxu0 %v127
    %308 = vmatpush.msra.mxu0 %v125
    %309 = vmatpush.msra.mxu0 %v123
    %310 = vmatpush.msra.mxu0 %v121
    %311 = vmatpush.msra.mxu0 %v119
    %312 = vmatpush.msra.mxu0 %v117
    %313 = vmatpush.msra.mxu0 %v115
    %314 = vmatpush.msra.mxu0 %v113
    %315 = vmatpush.msra.mxu0 %v111
    %316 = vmatpush.msra.mxu0 %v109
    %317 = vmatpush.msra.mxu0 %v107
    %318 = vmatpush.msra.mxu0 %v105
    %319 = vmatmul.f32.gmra.mxu0 %v57
    %v320 = vpop.f32.mrf.mxu0
    %v321 = vadd.f32 %v299, %v320
    %322 = vmatmul.f32.gmra.mxu0 %v63
    %v323 = vpop.f32.mrf.mxu0
    %v324 = vadd.f32 %v299, %v323
    %325 = vmatmul.f32.gmra.mxu0 %v69
    %v326 = vpop.f32.mrf.mxu0
    %v327 = vadd.f32 %v299, %v326
    %328 = vmatmul.f32.gmra.mxu0 %v75
    %v329 = vpop.f32.mrf.mxu0
    %v330 = vadd.f32 %v299, %v329
    %331 = vmatmul.f32.gmra.mxu0 %v81
    %v332 = vpop.f32.mrf.mxu0
    %v333 = vadd.f32 %v299, %v332
    %334 = vmatmul.f32.gmra.mxu0 %v87
    %v335 = vpop.f32.mrf.mxu0
    %v336 = vadd.f32 %v299, %v335
    %337 = vmatmul.f32.gmra.mxu0 %v93
    %v338 = vpop.f32.mrf.mxu0
    %v339 = vadd.f32 %v299, %v338
    %340 = vmatmul.f32.gmra.mxu0 %v99
    %v341 = vpop.f32.mrf.mxu0
    %v342 = vadd.f32 %v299, %v341
    %343 = vdwg.mxu0
    %344 = vmatpush.msra.mxu0 %v167
    %345 = vmatpush.msra.mxu0 %v165
    %346 = vmatpush.msra.mxu0 %v163
    %347 = vmatpush.msra.mxu0 %v161
    %348 = vmatpush.msra.mxu0 %v159
    %349 = vmatpush.msra.mxu0 %v157
    %350 = vmatpush.msra.mxu0 %v155
    %351 = vmatpush.msra.mxu0 %v153
    %352 = vmatpush.msra.mxu0 %v151
    %353 = vmatpush.msra.mxu0 %v149
    %354 = vmatpush.msra.mxu0 %v147
    %355 = vmatpush.msra.mxu0 %v145
    %356 = vmatpush.msra.mxu0 %v143
    %357 = vmatpush.msra.mxu0 %v141
    %358 = vmatpush.msra.mxu0 %v139
    %359 = vmatpush.msra.mxu0 %v137
    %360 = vmatmul.f32.gmra.mxu0 %v58
    %v361 = vpop.f32.mrf.mxu0
    %v362 = vadd.f32 %v321, %v361
    %363 = vmatmul.f32.gmra.mxu0 %v64
    %v364 = vpop.f32.mrf.mxu0
    %v365 = vadd.f32 %v324, %v364
    %366 = vmatmul.f32.gmra.mxu0 %v70
    %v367 = vpop.f32.mrf.mxu0
    %v368 = vadd.f32 %v327, %v367
    %369 = vmatmul.f32.gmra.mxu0 %v76
    %v370 = vpop.f32.mrf.mxu0
    %v371 = vadd.f32 %v330, %v370
    %372 = vmatmul.f32.gmra.mxu0 %v82
    %v373 = vpop.f32.mrf.mxu0
    %v374 = vadd.f32 %v333, %v373
    %375 = vmatmul.f32.gmra.mxu0 %v88
    %v376 = vpop.f32.mrf.mxu0
    %v377 = vadd.f32 %v336, %v376
    %378 = vmatmul.f32.gmra.mxu0 %v94
    %v379 = vpop.f32.mrf.mxu0
    %v380 = vadd.f32 %v339, %v379
    %381 = vmatmul.f32.gmra.mxu0 %v100
    %v382 = vpop.f32.mrf.mxu0
    %v383 = vadd.f32 %v342, %v382
    %384 = vdwg.mxu0
    %385 = vmatpush.msra.mxu0 %v199
    %386 = vmatpush.msra.mxu0 %v197
    %387 = vmatpush.msra.mxu0 %v195
    %388 = vmatpush.msra.mxu0 %v193
    %389 = vmatpush.msra.mxu0 %v191
    %390 = vmatpush.msra.mxu0 %v189
    %391 = vmatpush.msra.mxu0 %v187
    %392 = vmatpush.msra.mxu0 %v185
    %393 = vmatpush.msra.mxu0 %v183
    %394 = vmatpush.msra.mxu0 %v181
    %395 = vmatpush.msra.mxu0 %v179
    %396 = vmatpush.msra.mxu0 %v177
    %397 = vmatpush.msra.mxu0 %v175
    %398 = vmatpush.msra.mxu0 %v173
    %399 = vmatpush.msra.mxu0 %v171
    %400 = vmatpush.msra.mxu0 %v169
    %401 = vmatmul.f32.gmra.mxu0 %v59
    %v402 = vpop.f32.mrf.mxu0
    %v403 = vadd.f32 %v362, %v402
    %404 = vmatmul.f32.gmra.mxu0 %v65
    %v405 = vpop.f32.mrf.mxu0
    %v406 = vadd.f32 %v365, %v405
    %407 = vmatmul.f32.gmra.mxu0 %v71
    %v408 = vpop.f32.mrf.mxu0
    %v409 = vadd.f32 %v368, %v408
    %410 = vmatmul.f32.gmra.mxu0 %v77
    %v411 = vpop.f32.mrf.mxu0
    %v412 = vadd.f32 %v371, %v411
    %413 = vmatmul.f32.gmra.mxu0 %v83
    %v414 = vpop.f32.mrf.mxu0
    %v415 = vadd.f32 %v374, %v414
    %416 = vmatmul.f32.gmra.mxu0 %v89
    %v417 = vpop.f32.mrf.mxu0
    %v418 = vadd.f32 %v377, %v417
    %419 = vmatmul.f32.gmra.mxu0 %v95
    %v420 = vpop.f32.mrf.mxu0
    %v421 = vadd.f32 %v380, %v420
    %422 = vmatmul.f32.gmra.mxu0 %v101
    %v423 = vpop.f32.mrf.mxu0
    %v424 = vadd.f32 %v383, %v423
    %425 = vdwg.mxu0
    %426 = vmatpush.msra.mxu0 %v231
    %427 = vmatpush.msra.mxu0 %v229
    %428 = vmatpush.msra.mxu0 %v227
    %429 = vmatpush.msra.mxu0 %v225
    %430 = vmatpush.msra.mxu0 %v223
    %431 = vmatpush.msra.mxu0 %v221
    %432 = vmatpush.msra.mxu0 %v219
    %433 = vmatpush.msra.mxu0 %v217
    %434 = vmatpush.msra.mxu0 %v215
    %435 = vmatpush.msra.mxu0 %v213
    %436 = vmatpush.msra.mxu0 %v211
    %437 = vmatpush.msra.mxu0 %v209
    %438 = vmatpush.msra.mxu0 %v207
    %439 = vmatpush.msra.mxu0 %v205
    %440 = vmatpush.msra.mxu0 %v203
    %441 = vmatpush.msra.mxu0 %v201
    %442 = vmatmul.f32.gmra.mxu0 %v60
    %v443 = vpop.f32.mrf.mxu0
    %v444 = vadd.f32 %v403, %v443
    %445 = vmatmul.f32.gmra.mxu0 %v66
    %v446 = vpop.f32.mrf.mxu0
    %v447 = vadd.f32 %v406, %v446
    %448 = vmatmul.f32.gmra.mxu0 %v72
    %v449 = vpop.f32.mrf.mxu0
    %v450 = vadd.f32 %v409, %v449
    %451 = vmatmul.f32.gmra.mxu0 %v78
    %v452 = vpop.f32.mrf.mxu0
    %v453 = vadd.f32 %v412, %v452
    %454 = vmatmul.f32.gmra.mxu0 %v84
    %v455 = vpop.f32.mrf.mxu0
    %v456 = vadd.f32 %v415, %v455
    %457 = vmatmul.f32.gmra.mxu0 %v90
    %v458 = vpop.f32.mrf.mxu0
    %v459 = vadd.f32 %v418, %v458
    %460 = vmatmul.f32.gmra.mxu0 %v96
    %v461 = vpop.f32.mrf.mxu0
    %v462 = vadd.f32 %v421, %v461
    %463 = vmatmul.f32.gmra.mxu0 %v102
    %v464 = vpop.f32.mrf.mxu0
    %v465 = vadd.f32 %v424, %v464
    %466 = vdwg.mxu0
    %467 = vmatpush.msra.mxu0 %v263
    %468 = vmatpush.msra.mxu0 %v261
    %469 = vmatpush.msra.mxu0 %v259
    %470 = vmatpush.msra.mxu0 %v257
    %471 = vmatpush.msra.mxu0 %v255
    %472 = vmatpush.msra.mxu0 %v253
    %473 = vmatpush.msra.mxu0 %v251
    %474 = vmatpush.msra.mxu0 %v249
    %475 = vmatpush.msra.mxu0 %v247
    %476 = vmatpush.msra.mxu0 %v245
    %477 = vmatpush.msra.mxu0 %v243
    %478 = vmatpush.msra.mxu0 %v241
    %479 = vmatpush.msra.mxu0 %v239
    %480 = vmatpush.msra.mxu0 %v237
    %481 = vmatpush.msra.mxu0 %v235
    %482 = vmatpush.msra.mxu0 %v233
    %483 = vmatmul.f32.gmra.mxu0 %v61
    %v484 = vpop.f32.mrf.mxu0
    %v485 = vadd.f32 %v444, %v484
    %486 = vmatmul.f32.gmra.mxu0 %v67
    %v487 = vpop.f32.mrf.mxu0
    %v488 = vadd.f32 %v447, %v487
    %489 = vmatmul.f32.gmra.mxu0 %v73
    %v490 = vpop.f32.mrf.mxu0
    %v491 = vadd.f32 %v450, %v490
    %492 = vmatmul.f32.gmra.mxu0 %v79
    %v493 = vpop.f32.mrf.mxu0
    %v494 = vadd.f32 %v453, %v493
    %495 = vmatmul.f32.gmra.mxu0 %v85
    %v496 = vpop.f32.mrf.mxu0
    %v497 = vadd.f32 %v456, %v496
    %498 = vmatmul.f32.gmra.mxu0 %v91
    %v499 = vpop.f32.mrf.mxu0
    %v500 = vadd.f32 %v459, %v499
    %501 = vmatmul.f32.gmra.mxu0 %v97
    %v502 = vpop.f32.mrf.mxu0
    %v503 = vadd.f32 %v462, %v502
    %504 = vmatmul.f32.gmra.mxu0 %v103
    %v505 = vpop.f32.mrf.mxu0
    %v506 = vadd.f32 %v465, %v505
    %507 = vdwg.mxu0
    %508 = vmatpush.msra.mxu0 %v295
    %509 = vmatpush.msra.mxu0 %v293
    %510 = vmatpush.msra.mxu0 %v291
    %511 = vmatpush.msra.mxu0 %v289
    %512 = vmatpush.msra.mxu0 %v287
    %513 = vmatpush.msra.mxu0 %v285
    %514 = vmatpush.msra.mxu0 %v283
    %515 = vmatpush.msra.mxu0 %v281
    %516 = vmatpush.msra.mxu0 %v279
    %517 = vmatpush.msra.mxu0 %v277
    %518 = vmatpush.msra.mxu0 %v275
    %519 = vmatpush.msra.mxu0 %v273
    %520 = vmatpush.msra.mxu0 %v271
    %521 = vmatpush.msra.mxu0 %v269
    %522 = vmatpush.msra.mxu0 %v267
    %523 = vmatpush.msra.mxu0 %v265
    %524 = vmatmul.f32.gmra.mxu0 %v62
    %v525 = vpop.f32.mrf.mxu0
    %v526 = vadd.f32 %v485, %v525
    %527 = vmatmul.f32.gmra.mxu0 %v68
    %v528 = vpop.f32.mrf.mxu0
    %v529 = vadd.f32 %v488, %v528
    %530 = vmatmul.f32.gmra.mxu0 %v74
    %v531 = vpop.f32.mrf.mxu0
    %v532 = vadd.f32 %v491, %v531
    %533 = vmatmul.f32.gmra.mxu0 %v80
    %v534 = vpop.f32.mrf.mxu0
    %v535 = vadd.f32 %v494, %v534
    %536 = vmatmul.f32.gmra.mxu0 %v86
    %v537 = vpop.f32.mrf.mxu0
    %v538 = vadd.f32 %v497, %v537
    %539 = vmatmul.f32.gmra.mxu0 %v92
    %v540 = vpop.f32.mrf.mxu0
    %v541 = vadd.f32 %v500, %v540
    %542 = vmatmul.f32.gmra.mxu0 %v98
    %v543 = vpop.f32.mrf.mxu0
    %v544 = vadd.f32 %v503, %v543
    %545 = vmatmul.f32.gmra.mxu0 %v104
    %v546 = vpop.f32.mrf.mxu0
    %v547 = vadd.f32 %v506, %v546
    %548 = vdwg.mxu0
    %549 = vmatpush.msra.mxu0 %v136
    %550 = vmatpush.msra.mxu0 %v134
    %551 = vmatpush.msra.mxu0 %v132
    %552 = vmatpush.msra.mxu0 %v130
    %553 = vmatpush.msra.mxu0 %v128
    %554 = vmatpush.msra.mxu0 %v126
    %555 = vmatpush.msra.mxu0 %v124
    %556 = vmatpush.msra.mxu0 %v122
    %557 = vmatpush.msra.mxu0 %v120
    %558 = vmatpush.msra.mxu0 %v118
    %559 = vmatpush.msra.mxu0 %v116
    %560 = vmatpush.msra.mxu0 %v114
    %561 = vmatpush.msra.mxu0 %v112
    %562 = vmatpush.msra.mxu0 %v110
    %563 = vmatpush.msra.mxu0 %v108
    %564 = vmatpush.msra.mxu0 %v106
    %565 = vmatmul.f32.gmra.mxu0 %v57
    %v566 = vpop.f32.mrf.mxu0
    %v567 = vadd.f32 %v300, %v566
    %568 = vmatmul.f32.gmra.mxu0 %v63
    %v569 = vpop.f32.mrf.mxu0
    %v570 = vadd.f32 %v300, %v569
    %571 = vmatmul.f32.gmra.mxu0 %v69
    %v572 = vpop.f32.mrf.mxu0
    %v573 = vadd.f32 %v300, %v572
    %574 = vmatmul.f32.gmra.mxu0 %v75
    %v575 = vpop.f32.mrf.mxu0
    %v576 = vadd.f32 %v300, %v575
    %577 = vmatmul.f32.gmra.mxu0 %v81
    %v578 = vpop.f32.mrf.mxu0
    %v579 = vadd.f32 %v300, %v578
    %580 = vmatmul.f32.gmra.mxu0 %v87
    %v581 = vpop.f32.mrf.mxu0
    %v582 = vadd.f32 %v300, %v581
    %583 = vmatmul.f32.gmra.mxu0 %v93
    %v584 = vpop.f32.mrf.mxu0
    %v585 = vadd.f32 %v300, %v584
    %586 = vmatmul.f32.gmra.mxu0 %v99
    %v587 = vpop.f32.mrf.mxu0
    %v588 = vadd.f32 %v300, %v587
    %589 = vdwg.mxu0
    %590 = vmatpush.msra.mxu0 %v168
    %591 = vmatpush.msra.mxu0 %v166
    %592 = vmatpush.msra.mxu0 %v164
    %593 = vmatpush.msra.mxu0 %v162
    %594 = vmatpush.msra.mxu0 %v160
    %595 = vmatpush.msra.mxu0 %v158
    %596 = vmatpush.msra.mxu0 %v156
    %597 = vmatpush.msra.mxu0 %v154
    %598 = vmatpush.msra.mxu0 %v152
    %599 = vmatpush.msra.mxu0 %v150
    %600 = vmatpush.msra.mxu0 %v148
    %601 = vmatpush.msra.mxu0 %v146
    %602 = vmatpush.msra.mxu0 %v144
    %603 = vmatpush.msra.mxu0 %v142
    %604 = vmatpush.msra.mxu0 %v140
    %605 = vmatpush.msra.mxu0 %v138
    %606 = vmatmul.f32.gmra.mxu0 %v58
    %v607 = vpop.f32.mrf.mxu0
    %v608 = vadd.f32 %v567, %v607
    %609 = vmatmul.f32.gmra.mxu0 %v64
    %v610 = vpop.f32.mrf.mxu0
    %v611 = vadd.f32 %v570, %v610
    %612 = vmatmul.f32.gmra.mxu0 %v70
    %v613 = vpop.f32.mrf.mxu0
    %v614 = vadd.f32 %v573, %v613
    %615 = vmatmul.f32.gmra.mxu0 %v76
    %v616 = vpop.f32.mrf.mxu0
    %v617 = vadd.f32 %v576, %v616
    %618 = vmatmul.f32.gmra.mxu0 %v82
    %v619 = vpop.f32.mrf.mxu0
    %v620 = vadd.f32 %v579, %v619
    %621 = vmatmul.f32.gmra.mxu0 %v88
    %v622 = vpop.f32.mrf.mxu0
    %v623 = vadd.f32 %v582, %v622
    %624 = vmatmul.f32.gmra.mxu0 %v94
    %v625 = vpop.f32.mrf.mxu0
    %v626 = vadd.f32 %v585, %v625
    %627 = vmatmul.f32.gmra.mxu0 %v100
    %v628 = vpop.f32.mrf.mxu0
    %v629 = vadd.f32 %v588, %v628
    %630 = vdwg.mxu0
    %631 = vmatpush.msra.mxu0 %v200
    %632 = vmatpush.msra.mxu0 %v198
    %633 = vmatpush.msra.mxu0 %v196
    %634 = vmatpush.msra.mxu0 %v194
    %635 = vmatpush.msra.mxu0 %v192
    %636 = vmatpush.msra.mxu0 %v190
    %637 = vmatpush.msra.mxu0 %v188
    %638 = vmatpush.msra.mxu0 %v186
    %639 = vmatpush.msra.mxu0 %v184
    %640 = vmatpush.msra.mxu0 %v182
    %641 = vmatpush.msra.mxu0 %v180
    %642 = vmatpush.msra.mxu0 %v178
    %643 = vmatpush.msra.mxu0 %v176
    %644 = vmatpush.msra.mxu0 %v174
    %645 = vmatpush.msra.mxu0 %v172
    %646 = vmatpush.msra.mxu0 %v170
    %647 = vmatmul.f32.gmra.mxu0 %v59
    %v648 = vpop.f32.mrf.mxu0
    %v649 = vadd.f32 %v608, %v648
    %650 = vmatmul.f32.gmra.mxu0 %v65
    %v651 = vpop.f32.mrf.mxu0
    %v652 = vadd.f32 %v611, %v651
    %653 = vmatmul.f32.gmra.mxu0 %v71
    %v654 = vpop.f32.mrf.mxu0
    %v655 = vadd.f32 %v614, %v654
    %656 = vmatmul.f32.gmra.mxu0 %v77
    %v657 = vpop.f32.mrf.mxu0
    %v658 = vadd.f32 %v617, %v657
    %659 = vmatmul.f32.gmra.mxu0 %v83
    %v660 = vpop.f32.mrf.mxu0
    %v661 = vadd.f32 %v620, %v660
    %662 = vmatmul.f32.gmra.mxu0 %v89
    %v663 = vpop.f32.mrf.mxu0
    %v664 = vadd.f32 %v623, %v663
    %665 = vmatmul.f32.gmra.mxu0 %v95
    %v666 = vpop.f32.mrf.mxu0
    %v667 = vadd.f32 %v626, %v666
    %668 = vmatmul.f32.gmra.mxu0 %v101
    %v669 = vpop.f32.mrf.mxu0
    %v670 = vadd.f32 %v629, %v669
    %671 = vdwg.mxu0
    %672 = vmatpush.msra.mxu0 %v232
    %673 = vmatpush.msra.mxu0 %v230
    %674 = vmatpush.msra.mxu0 %v228
    %675 = vmatpush.msra.mxu0 %v226
    %676 = vmatpush.msra.mxu0 %v224
    %677 = vmatpush.msra.mxu0 %v222
    %678 = vmatpush.msra.mxu0 %v220
    %679 = vmatpush.msra.mxu0 %v218
    %680 = vmatpush.msra.mxu0 %v216
    %681 = vmatpush.msra.mxu0 %v214
    %682 = vmatpush.msra.mxu0 %v212
    %683 = vmatpush.msra.mxu0 %v210
    %684 = vmatpush.msra.mxu0 %v208
    %685 = vmatpush.msra.mxu0 %v206
    %686 = vmatpush.msra.mxu0 %v204
    %687 = vmatpush.msra.mxu0 %v202
    %688 = vmatmul.f32.gmra.mxu0 %v60
    %v689 = vpop.f32.mrf.mxu0
    %v690 = vadd.f32 %v649, %v689
    %691 = vmatmul.f32.gmra.mxu0 %v66
    %v692 = vpop.f32.mrf.mxu0
    %v693 = vadd.f32 %v652, %v692
    %694 = vmatmul.f32.gmra.mxu0 %v72
    %v695 = vpop.f32.mrf.mxu0
    %v696 = vadd.f32 %v655, %v695
    %697 = vmatmul.f32.gmra.mxu0 %v78
    %v698 = vpop.f32.mrf.mxu0
    %v699 = vadd.f32 %v658, %v698
    %700 = vmatmul.f32.gmra.mxu0 %v84
    %v701 = vpop.f32.mrf.mxu0
    %v702 = vadd.f32 %v661, %v701
    %703 = vmatmul.f32.gmra.mxu0 %v90
    %v704 = vpop.f32.mrf.mxu0
    %v705 = vadd.f32 %v664, %v704
    %706 = vmatmul.f32.gmra.mxu0 %v96
    %v707 = vpop.f32.mrf.mxu0
    %v708 = vadd.f32 %v667, %v707
    %709 = vmatmul.f32.gmra.mxu0 %v102
    %v710 = vpop.f32.mrf.mxu0
    %v711 = vadd.f32 %v670, %v710
    %712 = vdwg.mxu0
    %713 = vmatpush.msra.mxu0 %v264
    %714 = vmatpush.msra.mxu0 %v262
    %715 = vmatpush.msra.mxu0 %v260
    %716 = vmatpush.msra.mxu0 %v258
    %717 = vmatpush.msra.mxu0 %v256
    %718 = vmatpush.msra.mxu0 %v254
    %719 = vmatpush.msra.mxu0 %v252
    %720 = vmatpush.msra.mxu0 %v250
    %721 = vmatpush.msra.mxu0 %v248
    %722 = vmatpush.msra.mxu0 %v246
    %723 = vmatpush.msra.mxu0 %v244
    %724 = vmatpush.msra.mxu0 %v242
    %725 = vmatpush.msra.mxu0 %v240
    %726 = vmatpush.msra.mxu0 %v238
    %727 = vmatpush.msra.mxu0 %v236
    %728 = vmatpush.msra.mxu0 %v234
    %729 = vmatmul.f32.gmra.mxu0 %v61
    %v730 = vpop.f32.mrf.mxu0
    %v731 = vadd.f32 %v690, %v730
    %732 = vmatmul.f32.gmra.mxu0 %v67
    %v733 = vpop.f32.mrf.mxu0
    %v734 = vadd.f32 %v693, %v733
    %735 = vmatmul.f32.gmra.mxu0 %v73
    %v736 = vpop.f32.mrf.mxu0
    %v737 = vadd.f32 %v696, %v736
    %738 = vmatmul.f32.gmra.mxu0 %v79
    %v739 = vpop.f32.mrf.mxu0
    %v740 = vadd.f32 %v699, %v739
    %741 = vmatmul.f32.gmra.mxu0 %v85
    %v742 = vpop.f32.mrf.mxu0
    %v743 = vadd.f32 %v702, %v742
    %744 = vmatmul.f32.gmra.mxu0 %v91
    %v745 = vpop.f32.mrf.mxu0
    %v746 = vadd.f32 %v705, %v745
    %747 = vmatmul.f32.gmra.mxu0 %v97
    %v748 = vpop.f32.mrf.mxu0
    %v749 = vadd.f32 %v708, %v748
    %750 = vmatmul.f32.gmra.mxu0 %v103
    %v751 = vpop.f32.mrf.mxu0
    %v752 = vadd.f32 %v711, %v751
    %753 = vdwg.mxu0
    %754 = vmatpush.msra.mxu0 %v296
    %755 = vmatpush.msra.mxu0 %v294
    %756 = vmatpush.msra.mxu0 %v292
    %757 = vmatpush.msra.mxu0 %v290
    %758 = vmatpush.msra.mxu0 %v288
    %759 = vmatpush.msra.mxu0 %v286
    %760 = vmatpush.msra.mxu0 %v284
    %761 = vmatpush.msra.mxu0 %v282
    %762 = vmatpush.msra.mxu0 %v280
    %763 = vmatpush.msra.mxu0 %v278
    %764 = vmatpush.msra.mxu0 %v276
    %765 = vmatpush.msra.mxu0 %v274
    %766 = vmatpush.msra.mxu0 %v272
    %767 = vmatpush.msra.mxu0 %v270
    %768 = vmatpush.msra.mxu0 %v268
    %769 = vmatpush.msra.mxu0 %v266
    %770 = vmatmul.f32.gmra.mxu0 %v62
    %v771 = vpop.f32.mrf.mxu0
    %v772 = vadd.f32 %v731, %v771
    %773 = vmatmul.f32.gmra.mxu0 %v68
    %v774 = vpop.f32.mrf.mxu0
    %v775 = vadd.f32 %v734, %v774
    %776 = vmatmul.f32.gmra.mxu0 %v74
    %v777 = vpop.f32.mrf.mxu0
    %v778 = vadd.f32 %v737, %v777
    %779 = vmatmul.f32.gmra.mxu0 %v80
    %v780 = vpop.f32.mrf.mxu0
    %v781 = vadd.f32 %v740, %v780
    %782 = vmatmul.f32.gmra.mxu0 %v86
    %v783 = vpop.f32.mrf.mxu0
    %v784 = vadd.f32 %v743, %v783
    %785 = vmatmul.f32.gmra.mxu0 %v92
    %v786 = vpop.f32.mrf.mxu0
    %v787 = vadd.f32 %v746, %v786
    %788 = vmatmul.f32.gmra.mxu0 %v98
    %v789 = vpop.f32.mrf.mxu0
    %v790 = vadd.f32 %v749, %v789
    %791 = vmatmul.f32.gmra.mxu0 %v104
    %v792 = vpop.f32.mrf.mxu0
    %v793 = vadd.f32 %v752, %v792
    %794 = vdwg.mxu0
    %v795 = vtanh.pop %v526
    %v796 = vtanh.pop %v772
    %v797 = vtanh.pop %v529
    %v798 = vtanh.pop %v775
    %v799 = vtanh.pop %v532
    %v800 = vtanh.pop %v778
    %v801 = vtanh.pop %v535
    %v802 = vtanh.pop %v781
    %v803 = vtanh.pop %v538
    %v804 = vtanh.pop %v784
    %v805 = vtanh.pop %v541
    %v806 = vtanh.pop %v787
    %v807 = vtanh.pop %v544
    %v808 = vtanh.pop %v790
    %v809 = vtanh.pop %v547
    %v810 = vtanh.pop %v793
    %v811 = vld [vmem:[%s4] sm:$0x3]
    %v813 = vperm.slane %v811, 0
    %v814 = vperm.slane %v811, 1
    %v817 = vmul.f32 %v795, %v813
    %v818 = vmul.f32 %v796, %v814
    %v819 = vmul.f32 %v797, %v813
    %v820 = vmul.f32 %v798, %v814
    %v821 = vmul.f32 %v799, %v813
    %v822 = vmul.f32 %v800, %v814
    %v823 = vmul.f32 %v801, %v813
    %v824 = vmul.f32 %v802, %v814
    %v825 = vmul.f32 %v803, %v813
    %v826 = vmul.f32 %v804, %v814
    %v827 = vmul.f32 %v805, %v813
    %v828 = vmul.f32 %v806, %v814
    %v829 = vmul.f32 %v807, %v813
    %v830 = vmul.f32 %v808, %v814
    %v831 = vmul.f32 %v809, %v813
    %v832 = vmul.f32 %v810, %v814
    %v833 = vadd.f32 %v817, %v818
    %834 = vadd.xlane.f32.xlu0 %v833
    %v835 = vpop.xlane.xlu0 %834
    %v836 = vadd.f32 %v819, %v820
    %837 = vadd.xlane.f32.xlu0 %v836
    %v838 = vpop.xlane.xlu0 %837
    %v839 = vadd.f32 %v821, %v822
    %840 = vadd.xlane.f32.xlu0 %v839
    %v841 = vpop.xlane.xlu0 %840
    %v842 = vadd.f32 %v823, %v824
    %843 = vadd.xlane.f32.xlu0 %v842
    %v844 = vpop.xlane.xlu0 %843
    %v845 = vadd.f32 %v825, %v826
    %846 = vadd.xlane.f32.xlu0 %v845
    %v847 = vpop.xlane.xlu0 %846
    %v848 = vadd.f32 %v827, %v828
    %849 = vadd.xlane.f32.xlu0 %v848
    %v850 = vpop.xlane.xlu0 %849
    %v851 = vadd.f32 %v829, %v830
    %852 = vadd.xlane.f32.xlu0 %v851
    %v853 = vpop.xlane.xlu0 %852
    %v854 = vadd.f32 %v831, %v832
    %855 = vadd.xlane.f32.xlu0 %v854
    %v856 = vpop.xlane.xlu0 %855
    %s857 = sld [smem:[#allocation2]]
    %v858 = vstv %s857
    %v859 = vadd.f32 %v835, %v858
    %v860 = vadd.f32 %v838, %v858
    %v861 = vadd.f32 %v841, %v858
    %v862 = vadd.f32 %v844, %v858
    %v863 = vadd.f32 %v847, %v858
    %v864 = vadd.f32 %v850, %v858
    %v865 = vadd.f32 %v853, %v858
    %v866 = vadd.f32 %v856, %v858
    %v867 = vmul.f32 %v859, 1.442695
    %v868 = vpow.pop %v867
    %v869 = vmul.f32 %v860, 1.442695
    %v870 = vpow.pop %v869
    %v871 = vmul.f32 %v861, 1.442695
    %v872 = vpow.pop %v871
    %v873 = vmul.f32 %v862, 1.442695
    %v874 = vpow.pop %v873
    %v875 = vmul.f32 %v863, 1.442695
    %v876 = vpow.pop %v875
    %v877 = vmul.f32 %v864, 1.442695
    %v878 = vpow.pop %v877
    %v879 = vmul.f32 %v865, 1.442695
    %v880 = vpow.pop %v879
    %v881 = vmul.f32 %v866, 1.442695
    %v882 = vpow.pop %v881
    %v883 = vld [vmem:[%s1] sm:$0xff]
    %v884 = vld [vmem:[%s1 + $0x8] sm:$0xff]
    %v885 = vld [vmem:[%s1 + $0x10] sm:$0xff]
    %v886 = vld [vmem:[%s1 + $0x18] sm:$0xff]
    %v887 = vld [vmem:[%s1 + $0x20] sm:$0xff]
    %v888 = vld [vmem:[%s1 + $0x28] sm:$0xff]
    %v889 = vld [vmem:[%s1 + $0x30] sm:$0xff]
    %v890 = vld [vmem:[%s1 + $0x38] sm:$0xff]
    %v891 = vmul.f32 %v868, %v883
    %v892 = vmul.f32 %v870, %v884
    %v893 = vmul.f32 %v872, %v885
    %v894 = vmul.f32 %v874, %v886
    %v895 = vmul.f32 %v876, %v887
    %v896 = vmul.f32 %v878, %v888
    %v897 = vmul.f32 %v880, %v889
    %v898 = vmul.f32 %v882, %v890
    %vm899 = vcmask 7168
    %v900 = vsel %vm899, %v891, 0.0
    %v901 = vrot.slane %v900, 4
    %v902 = vadd.f32 %v900, %v901
    %v903 = vrot.slane %v902, 2
    %v904 = vadd.f32 %v902, %v903
    %v905 = vrot.slane %v904, 1
    %v906 = vadd.f32 %v904, %v905
    %v907 = vsel %vm899, %v892, 0.0
    %v908 = vrot.slane %v907, 4
    %v909 = vadd.f32 %v907, %v908
    %v910 = vrot.slane %v909, 2
    %v911 = vadd.f32 %v909, %v910
    %v912 = vrot.slane %v911, 1
    %v913 = vadd.f32 %v911, %v912
    %v914 = vsel %vm899, %v893, 0.0
    %v915 = vrot.slane %v914, 4
    %v916 = vadd.f32 %v914, %v915
    %v917 = vrot.slane %v916, 2
    %v918 = vadd.f32 %v916, %v917
    %v919 = vrot.slane %v918, 1
    %v920 = vadd.f32 %v918, %v919
    %v921 = vsel %vm899, %v894, 0.0
    %v922 = vrot.slane %v921, 4
    %v923 = vadd.f32 %v921, %v922
    %v924 = vrot.slane %v923, 2
    %v925 = vadd.f32 %v923, %v924
    %v926 = vrot.slane %v925, 1
    %v927 = vadd.f32 %v925, %v926
    %v928 = vsel %vm899, %v895, 0.0
    %v929 = vrot.slane %v928, 4
    %v930 = vadd.f32 %v928, %v929
    %v931 = vrot.slane %v930, 2
    %v932 = vadd.f32 %v930, %v931
    %v933 = vrot.slane %v932, 1
    %v934 = vadd.f32 %v932, %v933
    %v935 = vsel %vm899, %v896, 0.0
    %v936 = vrot.slane %v935, 4
    %v937 = vadd.f32 %v935, %v936
    %v938 = vrot.slane %v937, 2
    %v939 = vadd.f32 %v937, %v938
    %v940 = vrot.slane %v939, 1
    %v941 = vadd.f32 %v939, %v940
    %v942 = vsel %vm899, %v897, 0.0
    %v943 = vrot.slane %v942, 4
    %v944 = vadd.f32 %v942, %v943
    %v945 = vrot.slane %v944, 2
    %v946 = vadd.f32 %v944, %v945
    %v947 = vrot.slane %v946, 1
    %v948 = vadd.f32 %v946, %v947
    %v949 = vsel %vm899, %v898, 0.0
    %v950 = vrot.slane %v949, 4
    %v951 = vadd.f32 %v949, %v950
    %v952 = vrot.slane %v951, 2
    %v953 = vadd.f32 %v951, %v952
    %v954 = vrot.slane %v953, 1
    %v955 = vadd.f32 %v953, %v954
    %v956 = vadd.f32 %v906, 1e-08
    %v957 = vadd.f32 %v913, 1e-08
    %v958 = vadd.f32 %v920, 1e-08
    %v959 = vadd.f32 %v927, 1e-08
    %v960 = vadd.f32 %v934, 1e-08
    %v961 = vadd.f32 %v941, 1e-08
    %v962 = vadd.f32 %v948, 1e-08
    %v963 = vadd.f32 %v955, 1e-08
    %v964 = vrcp.pop %v956
    %v965 = vmul.f32 %v956, %v964
    %v966 = vsub.f32 1.0, %v965
    %v967 = vmul.f32 %v964, %v966
    %v968 = vadd.f32 %v964, %v967
    %vm969 = vweird.f32 %v956
    %vm970 = vweird.f32 %v964
    %vm971 = vmor %vm969, %vm970
    %v972 = vsel %vm971, %v964, %v968
    %v973 = vand.u32 2147483647, %v956
    %vm974 = vcmp.eq.f32.partialorder %v973, 8.507059e+37
    %v975 = vand.u32 %v956, 2147483648
    %v976 = vor.u32 1.1754944e-38, %v975
    %v977 = vsel %vm974, %v976, %v972
    %v978 = vmul.f32 %v891, %v977
    %v979 = vrcp.pop %v957
    %v980 = vmul.f32 %v957, %v979
    %v981 = vsub.f32 1.0, %v980
    %v982 = vmul.f32 %v979, %v981
    %v983 = vadd.f32 %v979, %v982
    %vm984 = vweird.f32 %v957
    %vm985 = vweird.f32 %v979
    %vm986 = vmor %vm984, %vm985
    %v987 = vsel %vm986, %v979, %v983
    %v988 = vand.u32 2147483647, %v957
    %vm989 = vcmp.eq.f32.partialorder %v988, 8.507059e+37
    %v990 = vand.u32 %v957, 2147483648
    %v991 = vor.u32 1.1754944e-38, %v990
    %v992 = vsel %vm989, %v991, %v987
    %v993 = vmul.f32 %v892, %v992
    %v994 = vrcp.pop %v958
    %v995 = vmul.f32 %v958, %v994
    %v996 = vsub.f32 1.0, %v995
    %v997 = vmul.f32 %v994, %v996
    %v998 = vadd.f32 %v994, %v997
    %vm999 = vweird.f32 %v958
    %vm1000 = vweird.f32 %v994
    %vm1001 = vmor %vm999, %vm1000
    %v1002 = vsel %vm1001, %v994, %v998
    %v1003 = vand.u32 2147483647, %v958
    %vm1004 = vcmp.eq.f32.partialorder %v1003, 8.507059e+37
    %v1005 = vand.u32 %v958, 2147483648
    %v1006 = vor.u32 1.1754944e-38, %v1005
    %v1007 = vsel %vm1004, %v1006, %v1002
    %v1008 = vmul.f32 %v893, %v1007
    %v1009 = vrcp.pop %v959
    %v1010 = vmul.f32 %v959, %v1009
    %v1011 = vsub.f32 1.0, %v1010
    %v1012 = vmul.f32 %v1009, %v1011
    %v1013 = vadd.f32 %v1009, %v1012
    %vm1014 = vweird.f32 %v959
    %vm1015 = vweird.f32 %v1009
    %vm1016 = vmor %vm1014, %vm1015
    %v1017 = vsel %vm1016, %v1009, %v1013
    %v1018 = vand.u32 2147483647, %v959
    %vm1019 = vcmp.eq.f32.partialorder %v1018, 8.507059e+37
    %v1020 = vand.u32 %v959, 2147483648
    %v1021 = vor.u32 1.1754944e-38, %v1020
    %v1022 = vsel %vm1019, %v1021, %v1017
    %v1023 = vmul.f32 %v894, %v1022
    %v1024 = vrcp.pop %v960
    %v1025 = vmul.f32 %v960, %v1024
    %v1026 = vsub.f32 1.0, %v1025
    %v1027 = vmul.f32 %v1024, %v1026
    %v1028 = vadd.f32 %v1024, %v1027
    %vm1029 = vweird.f32 %v960
    %vm1030 = vweird.f32 %v1024
    %vm1031 = vmor %vm1029, %vm1030
    %v1032 = vsel %vm1031, %v1024, %v1028
    %v1033 = vand.u32 2147483647, %v960
    %vm1034 = vcmp.eq.f32.partialorder %v1033, 8.507059e+37
    %v1035 = vand.u32 %v960, 2147483648
    %v1036 = vor.u32 1.1754944e-38, %v1035
    %v1037 = vsel %vm1034, %v1036, %v1032
    %v1038 = vmul.f32 %v895, %v1037
    %v1039 = vrcp.pop %v961
    %v1040 = vmul.f32 %v961, %v1039
    %v1041 = vsub.f32 1.0, %v1040
    %v1042 = vmul.f32 %v1039, %v1041
    %v1043 = vadd.f32 %v1039, %v1042
    %vm1044 = vweird.f32 %v961
    %vm1045 = vweird.f32 %v1039
    %vm1046 = vmor %vm1044, %vm1045
    %v1047 = vsel %vm1046, %v1039, %v1043
    %v1048 = vand.u32 2147483647, %v961
    %vm1049 = vcmp.eq.f32.partialorder %v1048, 8.507059e+37
    %v1050 = vand.u32 %v961, 2147483648
    %v1051 = vor.u32 1.1754944e-38, %v1050
    %v1052 = vsel %vm1049, %v1051, %v1047
    %v1053 = vmul.f32 %v896, %v1052
    %v1054 = vrcp.pop %v962
    %v1055 = vmul.f32 %v962, %v1054
    %v1056 = vsub.f32 1.0, %v1055
    %v1057 = vmul.f32 %v1054, %v1056
    %v1058 = vadd.f32 %v1054, %v1057
    %vm1059 = vweird.f32 %v962
    %vm1060 = vweird.f32 %v1054
    %vm1061 = vmor %vm1059, %vm1060
    %v1062 = vsel %vm1061, %v1054, %v1058
    %v1063 = vand.u32 2147483647, %v962
    %vm1064 = vcmp.eq.f32.partialorder %v1063, 8.507059e+37
    %v1065 = vand.u32 %v962, 2147483648
    %v1066 = vor.u32 1.1754944e-38, %v1065
    %v1067 = vsel %vm1064, %v1066, %v1062
    %v1068 = vmul.f32 %v897, %v1067
    %v1069 = vrcp.pop %v963
    %v1070 = vmul.f32 %v963, %v1069
    %v1071 = vsub.f32 1.0, %v1070
    %v1072 = vmul.f32 %v1069, %v1071
    %v1073 = vadd.f32 %v1069, %v1072
    %vm1074 = vweird.f32 %v963
    %vm1075 = vweird.f32 %v1069
    %vm1076 = vmor %vm1074, %vm1075
    %v1077 = vsel %vm1076, %v1069, %v1073
    %v1078 = vand.u32 2147483647, %v963
    %vm1079 = vcmp.eq.f32.partialorder %v1078, 8.507059e+37
    %v1080 = vand.u32 %v963, 2147483648
    %v1081 = vor.u32 1.1754944e-38, %v1080
    %v1082 = vsel %vm1079, %v1081, %v1077
    %v1083 = vmul.f32 %v898, %v1082
    %1085 = vset.pattern.permute.xlu0 0
    %1086 = vperm.xlu0 %1085, %v978
    %v1087 = vpop.permute.xlu0 %1086
    %1090 = vset.pattern.permute.xlu0 0
    %1091 = vperm.xlu0 %1090, %v993
    %v1092 = vpop.permute.xlu0 %1091
    %1095 = vset.pattern.permute.xlu0 0
    %1096 = vperm.xlu0 %1095, %v1008
    %v1097 = vpop.permute.xlu0 %1096
    %1100 = vset.pattern.permute.xlu0 0
    %1101 = vperm.xlu0 %1100, %v1023
    %v1102 = vpop.permute.xlu0 %1101
    %1105 = vset.pattern.permute.xlu0 0
    %1106 = vperm.xlu0 %1105, %v1038
    %v1107 = vpop.permute.xlu0 %1106
    %1110 = vset.pattern.permute.xlu0 0
    %1111 = vperm.xlu0 %1110, %v1053
    %v1112 = vpop.permute.xlu0 %1111
    %1115 = vset.pattern.permute.xlu0 0
    %1116 = vperm.xlu0 %1115, %v1068
    %v1117 = vpop.permute.xlu0 %1116
    %1120 = vset.pattern.permute.xlu0 0
    %1121 = vperm.xlu0 %1120, %v1083
    %v1122 = vpop.permute.xlu0 %1121
    %v1124 = vmul.f32 %v1087, %v57
    %v1125 = vmul.f32 %v1087, %v58
    %v1126 = vmul.f32 %v1087, %v59
    %v1127 = vmul.f32 %v1087, %v60
    %v1128 = vmul.f32 %v1087, %v61
    %v1129 = vmul.f32 %v1087, %v62
    %v1130 = vmul.f32 %v1092, %v63
    %v1131 = vmul.f32 %v1092, %v64
    %v1132 = vmul.f32 %v1092, %v65
    %v1133 = vmul.f32 %v1092, %v66
    %v1134 = vmul.f32 %v1092, %v67
    %v1135 = vmul.f32 %v1092, %v68
    %v1136 = vmul.f32 %v1097, %v69
    %v1137 = vmul.f32 %v1097, %v70
    %v1138 = vmul.f32 %v1097, %v71
    %v1139 = vmul.f32 %v1097, %v72
    %v1140 = vmul.f32 %v1097, %v73
    %v1141 = vmul.f32 %v1097, %v74
    %v1142 = vmul.f32 %v1102, %v75
    %v1143 = vmul.f32 %v1102, %v76
    %v1144 = vmul.f32 %v1102, %v77
    %v1145 = vmul.f32 %v1102, %v78
    %v1146 = vmul.f32 %v1102, %v79
    %v1147 = vmul.f32 %v1102, %v80
    %v1148 = vmul.f32 %v1107, %v81
    %v1149 = vmul.f32 %v1107, %v82
    %v1150 = vmul.f32 %v1107, %v83
    %v1151 = vmul.f32 %v1107, %v84
    %v1152 = vmul.f32 %v1107, %v85
    %v1153 = vmul.f32 %v1107, %v86
    %v1154 = vmul.f32 %v1112, %v87
    %v1155 = vmul.f32 %v1112, %v88
    %v1156 = vmul.f32 %v1112, %v89
    %v1157 = vmul.f32 %v1112, %v90
    %v1158 = vmul.f32 %v1112, %v91
    %v1159 = vmul.f32 %v1112, %v92
    %v1160 = vmul.f32 %v1117, %v93
    %v1161 = vmul.f32 %v1117, %v94
    %v1162 = vmul.f32 %v1117, %v95
    %v1163 = vmul.f32 %v1117, %v96
    %v1164 = vmul.f32 %v1117, %v97
    %v1165 = vmul.f32 %v1117, %v98
    %v1166 = vmul.f32 %v1122, %v99
    %v1167 = vmul.f32 %v1122, %v100
    %v1168 = vmul.f32 %v1122, %v101
    %v1169 = vmul.f32 %v1122, %v102
    %v1170 = vmul.f32 %v1122, %v103
    %v1171 = vmul.f32 %v1122, %v104
    %v1172 = vrot.slane %v1124, 4
    %v1173 = vadd.f32 %v1124, %v1172
    %v1174 = vrot.slane %v1173, 2
    %v1175 = vadd.f32 %v1173, %v1174
    %v1176 = vrot.slane %v1175, 1
    %v1177 = vadd.f32 %v1175, %v1176
    %v1178 = vrot.slane %v1125, 4
    %v1179 = vadd.f32 %v1125, %v1178
    %v1180 = vrot.slane %v1179, 2
    %v1181 = vadd.f32 %v1179, %v1180
    %v1182 = vrot.slane %v1181, 1
    %v1183 = vadd.f32 %v1181, %v1182
    %v1184 = vrot.slane %v1126, 4
    %v1185 = vadd.f32 %v1126, %v1184
    %v1186 = vrot.slane %v1185, 2
    %v1187 = vadd.f32 %v1185, %v1186
    %v1188 = vrot.slane %v1187, 1
    %v1189 = vadd.f32 %v1187, %v1188
    %v1190 = vrot.slane %v1127, 4
    %v1191 = vadd.f32 %v1127, %v1190
    %v1192 = vrot.slane %v1191, 2
    %v1193 = vadd.f32 %v1191, %v1192
    %v1194 = vrot.slane %v1193, 1
    %v1195 = vadd.f32 %v1193, %v1194
    %v1196 = vrot.slane %v1128, 4
    %v1197 = vadd.f32 %v1128, %v1196
    %v1198 = vrot.slane %v1197, 2
    %v1199 = vadd.f32 %v1197, %v1198
    %v1200 = vrot.slane %v1199, 1
    %v1201 = vadd.f32 %v1199, %v1200
    %v1202 = vrot.slane %v1129, 4
    %v1203 = vadd.f32 %v1129, %v1202
    %v1204 = vrot.slane %v1203, 2
    %v1205 = vadd.f32 %v1203, %v1204
    %v1206 = vrot.slane %v1205, 1
    %v1207 = vadd.f32 %v1205, %v1206
    %v1208 = vrot.slane %v1130, 4
    %v1209 = vadd.f32 %v1130, %v1208
    %v1210 = vrot.slane %v1209, 2
    %v1211 = vadd.f32 %v1209, %v1210
    %v1212 = vrot.slane %v1211, 1
    %v1213 = vadd.f32 %v1211, %v1212
    %v1214 = vrot.slane %v1131, 4
    %v1215 = vadd.f32 %v1131, %v1214
    %v1216 = vrot.slane %v1215, 2
    %v1217 = vadd.f32 %v1215, %v1216
    %v1218 = vrot.slane %v1217, 1
    %v1219 = vadd.f32 %v1217, %v1218
    %v1220 = vrot.slane %v1132, 4
    %v1221 = vadd.f32 %v1132, %v1220
    %v1222 = vrot.slane %v1221, 2
    %v1223 = vadd.f32 %v1221, %v1222
    %v1224 = vrot.slane %v1223, 1
    %v1225 = vadd.f32 %v1223, %v1224
    %v1226 = vrot.slane %v1133, 4
    %v1227 = vadd.f32 %v1133, %v1226
    %v1228 = vrot.slane %v1227, 2
    %v1229 = vadd.f32 %v1227, %v1228
    %v1230 = vrot.slane %v1229, 1
    %v1231 = vadd.f32 %v1229, %v1230
    %v1232 = vrot.slane %v1134, 4
    %v1233 = vadd.f32 %v1134, %v1232
    %v1234 = vrot.slane %v1233, 2
    %v1235 = vadd.f32 %v1233, %v1234
    %v1236 = vrot.slane %v1235, 1
    %v1237 = vadd.f32 %v1235, %v1236
    %v1238 = vrot.slane %v1135, 4
    %v1239 = vadd.f32 %v1135, %v1238
    %v1240 = vrot.slane %v1239, 2
    %v1241 = vadd.f32 %v1239, %v1240
    %v1242 = vrot.slane %v1241, 1
    %v1243 = vadd.f32 %v1241, %v1242
    %v1244 = vrot.slane %v1136, 4
    %v1245 = vadd.f32 %v1136, %v1244
    %v1246 = vrot.slane %v1245, 2
    %v1247 = vadd.f32 %v1245, %v1246
    %v1248 = vrot.slane %v1247, 1
    %v1249 = vadd.f32 %v1247, %v1248
    %v1250 = vrot.slane %v1137, 4
    %v1251 = vadd.f32 %v1137, %v1250
    %v1252 = vrot.slane %v1251, 2
    %v1253 = vadd.f32 %v1251, %v1252
    %v1254 = vrot.slane %v1253, 1
    %v1255 = vadd.f32 %v1253, %v1254
    %v1256 = vrot.slane %v1138, 4
    %v1257 = vadd.f32 %v1138, %v1256
    %v1258 = vrot.slane %v1257, 2
    %v1259 = vadd.f32 %v1257, %v1258
    %v1260 = vrot.slane %v1259, 1
    %v1261 = vadd.f32 %v1259, %v1260
    %v1262 = vrot.slane %v1139, 4
    %v1263 = vadd.f32 %v1139, %v1262
    %v1264 = vrot.slane %v1263, 2
    %v1265 = vadd.f32 %v1263, %v1264
    %v1266 = vrot.slane %v1265, 1
    %v1267 = vadd.f32 %v1265, %v1266
    %v1268 = vrot.slane %v1140, 4
    %v1269 = vadd.f32 %v1140, %v1268
    %v1270 = vrot.slane %v1269, 2
    %v1271 = vadd.f32 %v1269, %v1270
    %v1272 = vrot.slane %v1271, 1
    %v1273 = vadd.f32 %v1271, %v1272
    %v1274 = vrot.slane %v1141, 4
    %v1275 = vadd.f32 %v1141, %v1274
    %v1276 = vrot.slane %v1275, 2
    %v1277 = vadd.f32 %v1275, %v1276
    %v1278 = vrot.slane %v1277, 1
    %v1279 = vadd.f32 %v1277, %v1278
    %v1280 = vrot.slane %v1142, 4
    %v1281 = vadd.f32 %v1142, %v1280
    %v1282 = vrot.slane %v1281, 2
    %v1283 = vadd.f32 %v1281, %v1282
    %v1284 = vrot.slane %v1283, 1
    %v1285 = vadd.f32 %v1283, %v1284
    %v1286 = vrot.slane %v1143, 4
    %v1287 = vadd.f32 %v1143, %v1286
    %v1288 = vrot.slane %v1287, 2
    %v1289 = vadd.f32 %v1287, %v1288
    %v1290 = vrot.slane %v1289, 1
    %v1291 = vadd.f32 %v1289, %v1290
    %v1292 = vrot.slane %v1144, 4
    %v1293 = vadd.f32 %v1144, %v1292
    %v1294 = vrot.slane %v1293, 2
    %v1295 = vadd.f32 %v1293, %v1294
    %v1296 = vrot.slane %v1295, 1
    %v1297 = vadd.f32 %v1295, %v1296
    %v1298 = vrot.slane %v1145, 4
    %v1299 = vadd.f32 %v1145, %v1298
    %v1300 = vrot.slane %v1299, 2
    %v1301 = vadd.f32 %v1299, %v1300
    %v1302 = vrot.slane %v1301, 1
    %v1303 = vadd.f32 %v1301, %v1302
    %v1304 = vrot.slane %v1146, 4
    %v1305 = vadd.f32 %v1146, %v1304
    %v1306 = vrot.slane %v1305, 2
    %v1307 = vadd.f32 %v1305, %v1306
    %v1308 = vrot.slane %v1307, 1
    %v1309 = vadd.f32 %v1307, %v1308
    %v1310 = vrot.slane %v1147, 4
    %v1311 = vadd.f32 %v1147, %v1310
    %v1312 = vrot.slane %v1311, 2
    %v1313 = vadd.f32 %v1311, %v1312
    %v1314 = vrot.slane %v1313, 1
    %v1315 = vadd.f32 %v1313, %v1314
    %v1316 = vrot.slane %v1148, 4
    %v1317 = vadd.f32 %v1148, %v1316
    %v1318 = vrot.slane %v1317, 2
    %v1319 = vadd.f32 %v1317, %v1318
    %v1320 = vrot.slane %v1319, 1
    %v1321 = vadd.f32 %v1319, %v1320
    %v1322 = vrot.slane %v1149, 4
    %v1323 = vadd.f32 %v1149, %v1322
    %v1324 = vrot.slane %v1323, 2
    %v1325 = vadd.f32 %v1323, %v1324
    %v1326 = vrot.slane %v1325, 1
    %v1327 = vadd.f32 %v1325, %v1326
    %v1328 = vrot.slane %v1150, 4
    %v1329 = vadd.f32 %v1150, %v1328
    %v1330 = vrot.slane %v1329, 2
    %v1331 = vadd.f32 %v1329, %v1330
    %v1332 = vrot.slane %v1331, 1
    %v1333 = vadd.f32 %v1331, %v1332
    %v1334 = vrot.slane %v1151, 4
    %v1335 = vadd.f32 %v1151, %v1334
    %v1336 = vrot.slane %v1335, 2
    %v1337 = vadd.f32 %v1335, %v1336
    %v1338 = vrot.slane %v1337, 1
    %v1339 = vadd.f32 %v1337, %v1338
    %v1340 = vrot.slane %v1152, 4
    %v1341 = vadd.f32 %v1152, %v1340
    %v1342 = vrot.slane %v1341, 2
    %v1343 = vadd.f32 %v1341, %v1342
    %v1344 = vrot.slane %v1343, 1
    %v1345 = vadd.f32 %v1343, %v1344
    %v1346 = vrot.slane %v1153, 4
    %v1347 = vadd.f32 %v1153, %v1346
    %v1348 = vrot.slane %v1347, 2
    %v1349 = vadd.f32 %v1347, %v1348
    %v1350 = vrot.slane %v1349, 1
    %v1351 = vadd.f32 %v1349, %v1350
    %v1352 = vrot.slane %v1154, 4
    %v1353 = vadd.f32 %v1154, %v1352
    %v1354 = vrot.slane %v1353, 2
    %v1355 = vadd.f32 %v1353, %v1354
    %v1356 = vrot.slane %v1355, 1
    %v1357 = vadd.f32 %v1355, %v1356
    %v1358 = vrot.slane %v1155, 4
    %v1359 = vadd.f32 %v1155, %v1358
    %v1360 = vrot.slane %v1359, 2
    %v1361 = vadd.f32 %v1359, %v1360
    %v1362 = vrot.slane %v1361, 1
    %v1363 = vadd.f32 %v1361, %v1362
    %v1364 = vrot.slane %v1156, 4
    %v1365 = vadd.f32 %v1156, %v1364
    %v1366 = vrot.slane %v1365, 2
    %v1367 = vadd.f32 %v1365, %v1366
    %v1368 = vrot.slane %v1367, 1
    %v1369 = vadd.f32 %v1367, %v1368
    %v1370 = vrot.slane %v1157, 4
    %v1371 = vadd.f32 %v1157, %v1370
    %v1372 = vrot.slane %v1371, 2
    %v1373 = vadd.f32 %v1371, %v1372
    %v1374 = vrot.slane %v1373, 1
    %v1375 = vadd.f32 %v1373, %v1374
    %v1376 = vrot.slane %v1158, 4
    %v1377 = vadd.f32 %v1158, %v1376
    %v1378 = vrot.slane %v1377, 2
    %v1379 = vadd.f32 %v1377, %v1378
    %v1380 = vrot.slane %v1379, 1
    %v1381 = vadd.f32 %v1379, %v1380
    %v1382 = vrot.slane %v1159, 4
    %v1383 = vadd.f32 %v1159, %v1382
    %v1384 = vrot.slane %v1383, 2
    %v1385 = vadd.f32 %v1383, %v1384
    %v1386 = vrot.slane %v1385, 1
    %v1387 = vadd.f32 %v1385, %v1386
    %v1388 = vrot.slane %v1160, 4
    %v1389 = vadd.f32 %v1160, %v1388
    %v1390 = vrot.slane %v1389, 2
    %v1391 = vadd.f32 %v1389, %v1390
    %v1392 = vrot.slane %v1391, 1
    %v1393 = vadd.f32 %v1391, %v1392
    %v1394 = vrot.slane %v1161, 4
    %v1395 = vadd.f32 %v1161, %v1394
    %v1396 = vrot.slane %v1395, 2
    %v1397 = vadd.f32 %v1395, %v1396
    %v1398 = vrot.slane %v1397, 1
    %v1399 = vadd.f32 %v1397, %v1398
    %v1400 = vrot.slane %v1162, 4
    %v1401 = vadd.f32 %v1162, %v1400
    %v1402 = vrot.slane %v1401, 2
    %v1403 = vadd.f32 %v1401, %v1402
    %v1404 = vrot.slane %v1403, 1
    %v1405 = vadd.f32 %v1403, %v1404
    %v1406 = vrot.slane %v1163, 4
    %v1407 = vadd.f32 %v1163, %v1406
    %v1408 = vrot.slane %v1407, 2
    %v1409 = vadd.f32 %v1407, %v1408
    %v1410 = vrot.slane %v1409, 1
    %v1411 = vadd.f32 %v1409, %v1410
    %v1412 = vrot.slane %v1164, 4
    %v1413 = vadd.f32 %v1164, %v1412
    %v1414 = vrot.slane %v1413, 2
    %v1415 = vadd.f32 %v1413, %v1414
    %v1416 = vrot.slane %v1415, 1
    %v1417 = vadd.f32 %v1415, %v1416
    %v1418 = vrot.slane %v1165, 4
    %v1419 = vadd.f32 %v1165, %v1418
    %v1420 = vrot.slane %v1419, 2
    %v1421 = vadd.f32 %v1419, %v1420
    %v1422 = vrot.slane %v1421, 1
    %v1423 = vadd.f32 %v1421, %v1422
    %v1424 = vrot.slane %v1166, 4
    %v1425 = vadd.f32 %v1166, %v1424
    %v1426 = vrot.slane %v1425, 2
    %v1427 = vadd.f32 %v1425, %v1426
    %v1428 = vrot.slane %v1427, 1
    %v1429 = vadd.f32 %v1427, %v1428
    %v1430 = vrot.slane %v1167, 4
    %v1431 = vadd.f32 %v1167, %v1430
    %v1432 = vrot.slane %v1431, 2
    %v1433 = vadd.f32 %v1431, %v1432
    %v1434 = vrot.slane %v1433, 1
    %v1435 = vadd.f32 %v1433, %v1434
    %v1436 = vrot.slane %v1168, 4
    %v1437 = vadd.f32 %v1168, %v1436
    %v1438 = vrot.slane %v1437, 2
    %v1439 = vadd.f32 %v1437, %v1438
    %v1440 = vrot.slane %v1439, 1
    %v1441 = vadd.f32 %v1439, %v1440
    %v1442 = vrot.slane %v1169, 4
    %v1443 = vadd.f32 %v1169, %v1442
    %v1444 = vrot.slane %v1443, 2
    %v1445 = vadd.f32 %v1443, %v1444
    %v1446 = vrot.slane %v1445, 1
    %v1447 = vadd.f32 %v1445, %v1446
    %v1448 = vrot.slane %v1170, 4
    %v1449 = vadd.f32 %v1170, %v1448
    %v1450 = vrot.slane %v1449, 2
    %v1451 = vadd.f32 %v1449, %v1450
    %v1452 = vrot.slane %v1451, 1
    %v1453 = vadd.f32 %v1451, %v1452
    %v1454 = vrot.slane %v1171, 4
    %v1455 = vadd.f32 %v1171, %v1454
    %v1456 = vrot.slane %v1455, 2
    %v1457 = vadd.f32 %v1455, %v1456
    %v1458 = vrot.slane %v1457, 1
    %v1459 = vadd.f32 %v1457, %v1458
    %vm1508 = vcmask 1041409
    %v1509 = vsel %vm1508, %v1213, %v1177
    %vm1510 = vcmask 1042434
    %v1511 = vsel %vm1510, %v1249, %v1509
    %vm1512 = vcmask 1043459
    %v1513 = vsel %vm1512, %v1285, %v1511
    %vm1514 = vcmask 1044484
    %v1515 = vsel %vm1514, %v1321, %v1513
    %vm1516 = vcmask 1045509
    %v1517 = vsel %vm1516, %v1357, %v1515
    %vm1518 = vcmask 1046534
    %v1519 = vsel %vm1518, %v1393, %v1517
    %vm1520 = vcmask 1047559
    %v1521 = vsel %vm1520, %v1429, %v1519
    %v1522 = vsel %vm1508, %v1219, %v1183
    %v1523 = vsel %vm1510, %v1255, %v1522
    %v1524 = vsel %vm1512, %v1291, %v1523
    %v1525 = vsel %vm1514, %v1327, %v1524
    %v1526 = vsel %vm1516, %v1363, %v1525
    %v1527 = vsel %vm1518, %v1399, %v1526
    %v1528 = vsel %vm1520, %v1435, %v1527
    %v1529 = vsel %vm1508, %v1225, %v1189
    %v1530 = vsel %vm1510, %v1261, %v1529
    %v1531 = vsel %vm1512, %v1297, %v1530
    %v1532 = vsel %vm1514, %v1333, %v1531
    %v1533 = vsel %vm1516, %v1369, %v1532
    %v1534 = vsel %vm1518, %v1405, %v1533
    %v1535 = vsel %vm1520, %v1441, %v1534
    %v1536 = vsel %vm1508, %v1231, %v1195
    %v1537 = vsel %vm1510, %v1267, %v1536
    %v1538 = vsel %vm1512, %v1303, %v1537
    %v1539 = vsel %vm1514, %v1339, %v1538
    %v1540 = vsel %vm1516, %v1375, %v1539
    %v1541 = vsel %vm1518, %v1411, %v1540
    %v1542 = vsel %vm1520, %v1447, %v1541
    %v1543 = vsel %vm1508, %v1237, %v1201
    %v1544 = vsel %vm1510, %v1273, %v1543
    %v1545 = vsel %vm1512, %v1309, %v1544
    %v1546 = vsel %vm1514, %v1345, %v1545
    %v1547 = vsel %vm1516, %v1381, %v1546
    %v1548 = vsel %vm1518, %v1417, %v1547
    %v1549 = vsel %vm1520, %v1453, %v1548
    %v1550 = vsel %vm1508, %v1243, %v1207
    %v1551 = vsel %vm1510, %v1279, %v1550
    %v1552 = vsel %vm1512, %v1315, %v1551
    %v1553 = vsel %vm1514, %v1351, %v1552
    %v1554 = vsel %vm1516, %v1387, %v1553
    %v1555 = vsel %vm1518, %v1423, %v1554
    %v1556 = vsel %vm1520, %v1459, %v1555
    %1563 = vst [vmem:[#allocation8] sm:$0xff] %v1521
    %1564 = vst [vmem:[#allocation8 + $0x8] sm:$0xff] %v1528
    %1565 = vst [vmem:[#allocation8 + $0x10] sm:$0xff] %v1535
    %1566 = vst [vmem:[#allocation8 + $0x18] sm:$0xff] %v1542
    %1567 = vst [vmem:[#allocation8 + $0x20] sm:$0xff] %v1549
    %1568 = vst [vmem:[#allocation8 + $0x28] sm:$0xff] %v1556
    // Predicated region
    $region34: #{tpu_custom_call.1} parent=1 // pred_check
      _
    $region35: #{tpu_custom_call.1} parent=1 // pred_check_branch
      %1570 = sbr.rel (0) target = $region37
    $region36: #{tpu_custom_call.1} parent=1 // pred_region
      %1572 = vsyncadd [#allocation5], 0
      %s1574 = sshll.u32 [#allocation8], 4
      %s1575 = int_to_ptr.vmem [resolvable:$true] %s1574
      %s1576 = sshll.u32 %s6, 4
      %s1577 = int_to_ptr.hbm [resolvable:$true] %s1576
      %1579 = dma.vmem_to_hbm [thread:$0]  %s1575, 768, %s1577, [#allocation5]
    $region37: #{tpu_custom_call.1} parent=1 // pred_fallthru
      _
    // Predicated region
    $region38: #{tpu_custom_call.1} parent=1 // pred_check
      _
    $region39: #{tpu_custom_call.1} parent=1 // pred_check_branch
      %1581 = sbr.rel (0) target = $region41
    $region40: #{tpu_custom_call.1} parent=1 // pred_region
      %1583 = dma.done [#allocation5], 768
    $region41: #{tpu_custom_call.1} parent=1 // pred_fallthru
      _
    %1584 = vsyncpa [#allocation4], 1
    %1585 = vsyncpa [#allocation7], 1
    %1586 = vsyncpa [#allocation5], 1

</llo_original>
